<compile_context>
chip_gen: v5e
topology: v5e:2x2
jax: 0.10.0
libtpu: 0.0.40
codegen_flags: <defaults>
</compile_context>

<pallas_src>
import functools

import numpy as np
import jax
import jax.numpy as jnp
from jax.experimental import pallas as pl
from jax.experimental.pallas import tpu as pltpu

EXPANSION = 4
BN_EPS = 1e-5
LANES = 128
KSIZE = 27

_VMEM = pl.BlockSpec(memory_space=pltpu.MemorySpace.VMEM)


def _vmem_limit_bytes():
    # v5e/v6e: 128 MiB physical -> 96 MiB scoped; v7x: 64 MiB -> 48 MiB.
    try:
        return int(pltpu.get_tpu_info().vmem_capacity_bytes * 3 // 4)
    except Exception:
        return 48 * 1024 * 1024


_CP = pltpu.CompilerParams(vmem_limit_bytes=_vmem_limit_bytes())


def _round_up(x, m):
    return -(-x // m) * m


def _pad_to(a, rows, cols):
    return jnp.pad(a, ((0, rows - a.shape[0]), (0, cols - a.shape[1])))


def _bn_train(h, gamma, beta):
    """Training-mode BatchNorm1d over the point axis (biased variance).
    Two-pass (mean, then centered variance) to avoid cancellation."""
    inv_n = 1.0 / h.shape[0]
    mean = jnp.sum(h, axis=0, keepdims=True) * inv_n
    d = h - mean
    var = jnp.sum(d * d, axis=0, keepdims=True) * inv_n
    return d * jax.lax.rsqrt(var + BN_EPS) * gamma + beta


# ---------------------------------------------------------------------------
# Shared kernel pieces.
# ---------------------------------------------------------------------------
def _conv1_head(xb, w1_ref, g1_ref, b1_ref):
    """conv1 (1x1x1) + bn1 + relu.  Returns f32 [N, HP] (HP = 128-padded)."""
    h = jnp.dot(xb, w1_ref[...], preferred_element_type=jnp.float32)
    return jnp.maximum(_bn_train(h, g1_ref[...], b1_ref[...]), 0.0)


def _tail(acc2, xb, g2_ref, b2_ref, w3_ref, g3_ref, b3_ref,
          wd_ref, gd_ref, bd_ref, out_ref, *, has_downsample):
    """bn2 + relu + conv3 + bn3 + residual (downsample or identity-matmul) +
    add + relu, stored as a full 128-lane bf16 tile."""
    h2 = jnp.maximum(_bn_train(acc2, g2_ref[...], b2_ref[...]), 0.0)
    h3 = jnp.dot(h2.astype(jnp.bfloat16), w3_ref[...],
                 preferred_element_type=jnp.float32)
    h3 = _bn_train(h3, g3_ref[...], b3_ref[...])
    # Residual branch: wd is the real downsample weight, or a padded identity
    # when inplanes == planes*EXPANSION (no BN in that case).
    res = jnp.dot(xb, wd_ref[...], preferred_element_type=jnp.float32)
    if has_downsample:
        res = _bn_train(res, gd_ref[...], bd_ref[...])
    out_ref[...] = jnp.maximum(h3 + res, 0.0).astype(out_ref.dtype)


# ---------------------------------------------------------------------------
# Primary path: fully fused kernel (gather stays in VMEM).
# ---------------------------------------------------------------------------
def _fused_kernel(x_ref, nbr_ref, w1_ref, g1_ref, b1_ref, w2_ref, g2_ref,
                  b2_ref, w3_ref, g3_ref, b3_ref, wd_ref, gd_ref, bd_ref,
                  out_ref, *, has_downsample):
    xb = x_ref[...].astype(jnp.bfloat16)                       # [N, Cin]
    h = _conv1_head(xb, w1_ref, g1_ref, b1_ref)                # [N, HP] f32
    nbr = nbr_ref[...]                                         # [N, 27] i32
    n, hp = h.shape
    pp = w2_ref.shape[-1]
    acc2 = jnp.zeros((n, pp), jnp.float32)
    # 3x3x3 sparse conv: gather neighbor rows of the VMEM-resident h and
    # accumulate one 128-lane-contraction MXU matmul per kernel offset; the
    # gathered slab never exists in HBM.
    for k in range(KSIZE):
        col = nbr[:, k][:, None]                               # [N, 1]
        idx = jnp.broadcast_to(jnp.maximum(col, 0), (n, hp))
        gk = jnp.take_along_axis(h, idx, axis=0,
                                 mode="promise_in_bounds")     # [N, HP]
        gk = jnp.where(col >= 0, gk, 0.0)                      # mask absent taps
        acc2 = acc2 + jnp.dot(gk.astype(jnp.bfloat16), w2_ref[k],
                              preferred_element_type=jnp.float32)
    _tail(acc2, xb, g2_ref, b2_ref, w3_ref, g3_ref, b3_ref,
          wd_ref, gd_ref, bd_ref, out_ref, has_downsample=has_downsample)


# ---------------------------------------------------------------------------
# Fallback path: two kernels with the neighbor gather done by XLA in between
# (no wrapper-side pad pass, no f32 res round trip, bf16 lane-dense h/out).
# ---------------------------------------------------------------------------
def _stage1_kernel(x_ref, w1_ref, g1_ref, b1_ref, h_ref):
    xb = x_ref[...].astype(jnp.bfloat16)
    h_ref[...] = _conv1_head(xb, w1_ref, g1_ref, b1_ref).astype(h_ref.dtype)


def _stage2_kernel(g_ref, x_ref, w2_ref, g2_ref, b2_ref, w3_ref, g3_ref,
                   b3_ref, wd_ref, gd_ref, bd_ref, out_ref, *, has_downsample):
    acc2 = jnp.dot(g_ref[...], w2_ref[...],
                   preferred_element_type=jnp.float32)          # [N, PP]
    _tail(acc2, x_ref[...].astype(jnp.bfloat16), g2_ref, b2_ref, w3_ref,
          g3_ref, b3_ref, wd_ref, gd_ref, bd_ref, out_ref,
          has_downsample=has_downsample)


# ---------------------------------------------------------------------------
# Wrapper.
# ---------------------------------------------------------------------------
_FUSED_GATHER_OK = None  # None = not yet probed, True/False afterwards.


def _prep_params(params, has_downsample, inplanes):
    bf16 = jnp.bfloat16
    planes = params["w1"].shape[1]
    out_planes = params["w3"].shape[1]
    hp = _round_up(planes, LANES)
    op = _round_up(out_planes, LANES)
    p = {
        "w1": _pad_to(params["w1"], inplanes, hp).astype(bf16),
        "g1": _pad_to(params["g1"], 1, hp),
        "b1": _pad_to(params["b1"], 1, hp),
        "g2": _pad_to(params["g2"], 1, hp),
        "b2": _pad_to(params["b2"], 1, hp),
        "w3": _pad_to(params["w3"], hp, op).astype(bf16),
        "g3": _pad_to(params["g3"], 1, op),
        "b3": _pad_to(params["b3"], 1, op),
    }
    w2 = params["w2"]                                           # [27, P, P]
    p["w2_stack"] = jnp.pad(
        w2, ((0, 0), (0, hp - planes), (0, hp - planes))).astype(bf16)
    p["w2_flat"] = _pad_to(w2.reshape(KSIZE * planes, planes),
                           KSIZE * planes, hp).astype(bf16)
    if has_downsample:
        p["wd"] = _pad_to(params["wd"], inplanes, op).astype(bf16)
        p["gd"] = _pad_to(params["gd"], 1, op)
        p["bd"] = _pad_to(params["bd"], 1, op)
    else:
        # Identity residual (requires inplanes == planes*EXPANSION); realized
        # as a padded-identity MXU matmul so no in-kernel pad/concat is needed.
        p["wd"] = _pad_to(jnp.eye(inplanes, dtype=jnp.float32),
                          inplanes, op).astype(bf16)
        p["gd"] = jnp.ones((1, op), jnp.float32)
        p["bd"] = jnp.zeros((1, op), jnp.float32)
    return p, hp, op


def bottleneck_forward(feats, nbr, params, has_downsample):
    """Returns the block output in bf16 with channels zero-padded to a
    multiple of 128 lanes (downstream blocks can consume the padded layout;
    slice [:, :planes*4] only where the unpadded view is required)."""
    global _FUSED_GATHER_OK
    n, inplanes = feats.shape
    planes = params["w1"].shape[1]
    out_planes = params["w3"].shape[1]
    if not has_downsample and inplanes != out_planes:
        raise ValueError("identity residual requires inplanes == planes * 4")

    p, hp, op = _prep_params(params, has_downsample, inplanes)
    nbr = nbr.astype(jnp.int32)
    out_shape = jax.ShapeDtypeStruct((n, op), jnp.bfloat16)

    if _FUSED_GATHER_OK is not False:
        try:
            out = pl.pallas_call(
                functools.partial(_fused_kernel, has_downsample=has_downsample),
                out_shape=out_shape,
                in_specs=[_VMEM] * 14,
                out_specs=_VMEM,
                compiler_params=_CP,
            )(feats, nbr, p["w1"], p["g1"], p["b1"], p["w2_stack"], p["g2"],
              p["b2"], p["w3"], p["g3"], p["b3"], p["wd"], p["gd"], p["bd"])
            _FUSED_GATHER_OK = True
            return out
        except Exception:
            # In-kernel gather not supported by this jaxlib/TPU combination;
            # fall back to the two-stage path with an XLA gather.
            _FUSED_GATHER_OK = False

    # ---- fallback stage 1: conv1 + bn1 + relu, lane-dense bf16 h ----
    h = pl.pallas_call(
        _stage1_kernel,
        out_shape=jax.ShapeDtypeStruct((n, hp), jnp.bfloat16),
        in_specs=[_VMEM] * 4,
        out_specs=_VMEM,
        compiler_params=_CP,
    )(feats, p["w1"], p["g1"], p["b1"])

    # ---- neighbor gather in XLA (masked, unpadded [N, 27*planes] bf16) ----
    idx = jnp.maximum(nbr, 0)
    mask = (nbr >= 0)[..., None]
    gathered = jnp.where(mask, h[:, :planes][idx], 0)           # [N, 27, P]
    gathered = gathered.reshape(n, KSIZE * planes)

    # ---- fallback stage 2: conv2+bn2+relu+conv3+bn3+residual+relu ----
    out = pl.pallas_call(
        functools.partial(_stage2_kernel, has_downsample=has_downsample),
        out_shape=out_shape,
        in_specs=[_VMEM] * 11,
        out_specs=_VMEM,
        compiler_params=_CP,
    )(gathered, feats, p["w2_flat"], p["g2"], p["b2"], p["w3"], p["g3"],
      p["b3"], p["wd"], p["gd"], p["bd"])
    return out


# ---------------------------------------------------------------------------
# Pure-JAX references and a small deterministic test.
# ---------------------------------------------------------------------------
def reference_forward(feats, nbr, params, has_downsample, use_bf16=True):
    """use_bf16=True mirrors the kernel's precision (bf16 MXU inputs, f32
    accumulation/BN, bf16 output); use_bf16=False is the faithful f32 version
    of the PyTorch module (training-mode BN)."""
    low = (lambda a: a.astype(jnp.bfloat16)) if use_bf16 else (lambda a: a)
    mm = lambda a, b: jnp.dot(low(a), low(b), preferred_element_type=jnp.float32)
    n = feats.shape[0]
    planes = params["w1"].shape[1]

    h = jnp.maximum(_bn_train(mm(feats, params["w1"]),
                              params["g1"], params["b1"]), 0.0)
    idx = jnp.maximum(nbr, 0)
    mask = (nbr >= 0)[..., None]
    gathered = jnp.where(mask, h[idx], 0.0).reshape(n, KSIZE * planes)
    acc = mm(gathered, params["w2"].reshape(KSIZE * planes, planes))
    h2 = jnp.maximum(_bn_train(acc, params["g2"], params["b2"]), 0.0)
    h3 = _bn_train(mm(h2, params["w3"]), params["g3"], params["b3"])
    if has_downsample:
        res = _bn_train(mm(feats, params["wd"]), params["gd"], params["bd"])
    else:
        res = low(feats).astype(jnp.float32) if use_bf16 else feats
    out = jnp.maximum(h3 + res, 0.0)
    return out.astype(jnp.bfloat16) if use_bf16 else out


def build_neighbor_map(coords):
    """nbr[i, k] = index of the point at coords[i] + offset_k, else -1."""
    lut = {tuple(int(v) for v in c): i for i, c in enumerate(coords)}
    offsets = [(dx, dy, dz) for dx in (-1, 0, 1)
               for dy in (-1, 0, 1) for dz in (-1, 0, 1)]
    n = coords.shape[0]
    nbr = np.full((n, KSIZE), -1, dtype=np.int32)
    for i, c in enumerate(coords):
        for k, o in enumerate(offsets):
            nbr[i, k] = lut.get((int(c[0]) + o[0], int(c[1]) + o[1],
                                 int(c[2]) + o[2]), -1)
    return nbr


if __name__ == "__main__":
    key = jax.random.PRNGKey(0)
    inplanes, planes = 16, 8                       # out channels = 4*planes = 32
    out_planes = planes * EXPANSION
    has_downsample = inplanes != out_planes        # stride = 1 here

    # Sparse voxel set: 64 deterministic points out of a 5x5x5 grid.
    grid = 5
    all_coords = np.stack(np.meshgrid(np.arange(grid), np.arange(grid),
                                      np.arange(grid), indexing="ij"),
                          axis=-1).reshape(-1, 3).astype(np.int32)
    key, kperm = jax.random.split(key)
    perm = np.asarray(jax.random.permutation(kperm, all_coords.shape[0]))
    coords = all_coords[np.sort(perm[:64])]
    n_pts = coords.shape[0]
    nbr = jnp.asarray(build_neighbor_map(coords))

    # Deterministic synthetic parameters (MinkowskiConvolution has no bias).
    keys = jax.random.split(key, 12)
    params = {
        "w1": jax.random.normal(keys[0], (inplanes, planes), jnp.float32)
              / np.sqrt(inplanes),
        "g1": 1.0 + 0.1 * jax.random.normal(keys[1], (1, planes), jnp.float32),
        "b1": 0.1 * jax.random.normal(keys[2], (1, planes), jnp.float32),
        "w2": jax.random.normal(keys[3], (KSIZE, planes, planes), jnp.float32)
              / np.sqrt(KSIZE * planes),
        "g2": 1.0 + 0.1 * jax.random.normal(keys[4], (1, planes), jnp.float32),
        "b2": 0.1 * jax.random.normal(keys[5], (1, planes), jnp.float32),
        "w3": jax.random.normal(keys[6], (planes, out_planes), jnp.float32)
              / np.sqrt(planes),
        "g3": 1.0 + 0.1 * jax.random.normal(keys[7], (1, out_planes), jnp.float32),
        "b3": 0.1 * jax.random.normal(keys[8], (1, out_planes), jnp.float32),
        "wd": jax.random.normal(keys[9], (inplanes, out_planes), jnp.float32)
              / np.sqrt(inplanes),
        "gd": 1.0 + 0.1 * jax.random.normal(keys[10], (1, out_planes), jnp.float32),
        "bd": 0.1 * jax.random.normal(keys[11], (1, out_planes), jnp.float32),
    }

    key, kfeat = jax.random.split(key)
    feats = jax.random.normal(kfeat, (n_pts, inplanes), jnp.float32)

    out_pad = jax.block_until_ready(
        bottleneck_forward(feats, nbr, params, has_downsample))
    out = np.asarray(out_pad[:, :out_planes], dtype=np.float32)

    # Strict-ish check vs. a precision-matched (bf16 MXU + bf16 store)
    # reference, plus a looser sanity check vs. the pure-f32 module math.
    ref_bf16 = np.asarray(
        reference_forward(feats, nbr, params, has_downsample, use_bf16=True),
        dtype=np.float32)
    ref_f32 = np.asarray(
        reference_forward(feats, nbr, params, has_downsample, use_bf16=False),
        dtype=np.float32)

    if not np.allclose(out, ref_bf16, atol=2e-2, rtol=2e-2):
        raise AssertionError("Pallas kernels disagree with precision-matched reference")
    if not np.allclose(out, ref_f32, atol=1e-1, rtol=1e-1):
        raise AssertionError("Pallas kernels drift too far from f32 reference")

    print("KERNEL_OK")
</pallas_src>

<mosaic_0001>
module attributes {stable_mosaic.version = 11 : i64} {
  func.func @_fused_kernel(%arg0: memref<64x16xf32, #tpu.memory_space<vmem>>, %arg1: memref<64x27xi32, #tpu.memory_space<vmem>>, %arg2: memref<16x128xbf16, #tpu.memory_space<vmem>>, %arg3: memref<1x128xf32, #tpu.memory_space<vmem>>, %arg4: memref<1x128xf32, #tpu.memory_space<vmem>>, %arg5: memref<27x128x128xbf16, #tpu.memory_space<vmem>>, %arg6: memref<1x128xf32, #tpu.memory_space<vmem>>, %arg7: memref<1x128xf32, #tpu.memory_space<vmem>>, %arg8: memref<128x128xbf16, #tpu.memory_space<vmem>>, %arg9: memref<1x128xf32, #tpu.memory_space<vmem>>, %arg10: memref<1x128xf32, #tpu.memory_space<vmem>>, %arg11: memref<16x128xbf16, #tpu.memory_space<vmem>>, %arg12: memref<1x128xf32, #tpu.memory_space<vmem>>, %arg13: memref<1x128xf32, #tpu.memory_space<vmem>>, %arg14: memref<64x128xbf16, #tpu.memory_space<vmem>>) attributes {dimension_semantics = [], scalar_prefetch = 0 : i64, scratch_operands = 0 : i64, tpu.core_type = #tpu.core_type<tc>} {
    %c0 = arith.constant 0 : index
    %c0_0 = arith.constant 0 : index
    %0 = vector.load %arg0[%c0, %c0_0] : memref<64x16xf32, #tpu.memory_space<vmem>>, vector<64x16xf32>
    %1 = arith.truncf %0 : vector<64x16xf32> to vector<64x16xbf16>
    %c0_1 = arith.constant 0 : index
    %c0_2 = arith.constant 0 : index
    %2 = vector.load %arg2[%c0_1, %c0_2] : memref<16x128xbf16, #tpu.memory_space<vmem>>, vector<16x128xbf16>
    %cst = arith.constant dense<0.000000e+00> : vector<64x128xf32>
    %3 = tpu.matmul %1, %2, %cst {dimension_numbers = #tpu.dot_dimension_numbers<[1], [0], [0], [1], [0, 0, 1, 1], [], []>} : vector<64x16xbf16>, vector<16x128xbf16>, vector<64x128xf32> -> vector<64x128xf32>
    %c0_3 = arith.constant 0 : index
    %c0_4 = arith.constant 0 : index
    %4 = vector.load %arg3[%c0_3, %c0_4] : memref<1x128xf32, #tpu.memory_space<vmem>>, vector<1x128xf32>
    %c0_5 = arith.constant 0 : index
    %c0_6 = arith.constant 0 : index
    %5 = vector.load %arg4[%c0_5, %c0_6] : memref<1x128xf32, #tpu.memory_space<vmem>>, vector<1x128xf32>
    %cst_7 = arith.constant dense<0.000000e+00> : vector<128xf32>
    %6 = vector.multi_reduction <add>, %3, %cst_7 [0] : vector<64x128xf32> to vector<128xf32>
    %7 = vector.shape_cast %6 : vector<128xf32> to vector<1x128xf32>
    %cst_8 = arith.constant 1.562500e-02 : f32
    %8 = vector.broadcast %cst_8 : f32 to vector<1x128xf32>
    %9 = arith.mulf %7, %8 : vector<1x128xf32>
    %10 = vector.broadcast %9 : vector<1x128xf32> to vector<64x128xf32>
    %11 = arith.subf %3, %10 : vector<64x128xf32>
    %12 = arith.mulf %11, %11 : vector<64x128xf32>
    %cst_9 = arith.constant dense<0.000000e+00> : vector<128xf32>
    %13 = vector.multi_reduction <add>, %12, %cst_9 [0] : vector<64x128xf32> to vector<128xf32>
    %14 = vector.shape_cast %13 : vector<128xf32> to vector<1x128xf32>
    %cst_10 = arith.constant 1.562500e-02 : f32
    %15 = vector.broadcast %cst_10 : f32 to vector<1x128xf32>
    %16 = arith.mulf %14, %15 : vector<1x128xf32>
    %cst_11 = arith.constant 9.99999974E-6 : f32
    %17 = vector.broadcast %cst_11 : f32 to vector<1x128xf32>
    %18 = arith.addf %16, %17 : vector<1x128xf32>
    %19 = math.rsqrt %18 : vector<1x128xf32>
    %20 = vector.broadcast %19 : vector<1x128xf32> to vector<64x128xf32>
    %21 = arith.mulf %11, %20 : vector<64x128xf32>
    %22 = vector.broadcast %4 : vector<1x128xf32> to vector<64x128xf32>
    %23 = arith.mulf %21, %22 : vector<64x128xf32>
    %24 = vector.broadcast %5 : vector<1x128xf32> to vector<64x128xf32>
    %25 = arith.addf %23, %24 : vector<64x128xf32>
    %cst_12 = arith.constant 0.000000e+00 : f32
    %26 = vector.broadcast %cst_12 : f32 to vector<64x128xf32>
    %27 = arith.maximumf %25, %26 : vector<64x128xf32>
    %c0_13 = arith.constant 0 : index
    %c0_14 = arith.constant 0 : index
    %28 = vector.load %arg1[%c0_13, %c0_14] : memref<64x27xi32, #tpu.memory_space<vmem>>, vector<64x27xi32>
    %cst_15 = arith.constant 0.000000e+00 : f32
    %29 = vector.broadcast %cst_15 : f32 to vector<64x128xf32>
    %30 = vector.extract_strided_slice %28 {offsets = [0, 0], sizes = [64, 1], strides = [1, 1]} : vector<64x27xi32> to vector<64x1xi32>
    %31 = vector.shape_cast %30 : vector<64x1xi32> to vector<64xi32>
    %32 = vector.shape_cast %31 : vector<64xi32> to vector<64x1xi32>
    %c0_i32 = arith.constant 0 : i32
    %33 = vector.broadcast %c0_i32 : i32 to vector<64x1xi32>
    %34 = arith.maxsi %32, %33 : vector<64x1xi32>
    %35 = vector.shape_cast %34 : vector<64x1xi32> to vector<64x1xi32>
    %36 = vector.broadcast %35 : vector<64x1xi32> to vector<64x128xi32>
    %37 = vector.shape_cast %36 : vector<64x128xi32> to vector<64x128x1xi32>
    %38 = vector.shape_cast %37 : vector<64x128x1xi32> to vector<64x128xi32>
    %39 = tpu.dynamic_gather %27[%38] in [0] : vector<64x128xf32>, vector<64x128xi32> -> vector<64x128xf32>
    %c0_i32_16 = arith.constant 0 : i32
    %40 = vector.broadcast %c0_i32_16 : i32 to vector<64x1xi32>
    %41 = arith.cmpi sge, %32, %40 : vector<64x1xi32>
    %cst_17 = arith.constant 0.000000e+00 : f32
    %42 = vector.shape_cast %41 : vector<64x1xi1> to vector<64x1xi1>
    %43 = vector.broadcast %42 : vector<64x1xi1> to vector<64x128xi1>
    %44 = vector.broadcast %cst_17 : f32 to vector<64x128xf32>
    %45 = arith.select %43, %39, %44 : vector<64x128xi1>, vector<64x128xf32>
    %46 = arith.truncf %45 : vector<64x128xf32> to vector<64x128xbf16>
    %c0_18 = arith.constant 0 : index
    %c0_19 = arith.constant 0 : index
    %c0_20 = arith.constant 0 : index
    %47 = vector.load %arg5[%c0_18, %c0_19, %c0_20] : memref<27x128x128xbf16, #tpu.memory_space<vmem>>, vector<1x128x128xbf16>
    %48 = vector.shape_cast %47 : vector<1x128x128xbf16> to vector<128x128xbf16>
    %cst_21 = arith.constant dense<0.000000e+00> : vector<64x128xf32>
    %49 = tpu.matmul %46, %48, %cst_21 {dimension_numbers = #tpu.dot_dimension_numbers<[1], [0], [0], [1], [0, 0, 1, 1], [], []>} : vector<64x128xbf16>, vector<128x128xbf16>, vector<64x128xf32> -> vector<64x128xf32>
    %50 = arith.addf %29, %49 : vector<64x128xf32>
    %51 = vector.extract_strided_slice %28 {offsets = [0, 1], sizes = [64, 1], strides = [1, 1]} : vector<64x27xi32> to vector<64x1xi32>
    %52 = vector.shape_cast %51 : vector<64x1xi32> to vector<64xi32>
    %53 = vector.shape_cast %52 : vector<64xi32> to vector<64x1xi32>
    %c0_i32_22 = arith.constant 0 : i32
    %54 = vector.broadcast %c0_i32_22 : i32 to vector<64x1xi32>
    %55 = arith.maxsi %53, %54 : vector<64x1xi32>
    %56 = vector.shape_cast %55 : vector<64x1xi32> to vector<64x1xi32>
    %57 = vector.broadcast %56 : vector<64x1xi32> to vector<64x128xi32>
    %58 = vector.shape_cast %57 : vector<64x128xi32> to vector<64x128x1xi32>
    %59 = vector.shape_cast %58 : vector<64x128x1xi32> to vector<64x128xi32>
    %60 = tpu.dynamic_gather %27[%59] in [0] : vector<64x128xf32>, vector<64x128xi32> -> vector<64x128xf32>
    %c0_i32_23 = arith.constant 0 : i32
    %61 = vector.broadcast %c0_i32_23 : i32 to vector<64x1xi32>
    %62 = arith.cmpi sge, %53, %61 : vector<64x1xi32>
    %cst_24 = arith.constant 0.000000e+00 : f32
    %63 = vector.shape_cast %62 : vector<64x1xi1> to vector<64x1xi1>
    %64 = vector.broadcast %63 : vector<64x1xi1> to vector<64x128xi1>
    %65 = vector.broadcast %cst_24 : f32 to vector<64x128xf32>
    %66 = arith.select %64, %60, %65 : vector<64x128xi1>, vector<64x128xf32>
    %67 = arith.truncf %66 : vector<64x128xf32> to vector<64x128xbf16>
    %c1 = arith.constant 1 : index
    %c0_25 = arith.constant 0 : index
    %c0_26 = arith.constant 0 : index
    %68 = vector.load %arg5[%c1, %c0_25, %c0_26] : memref<27x128x128xbf16, #tpu.memory_space<vmem>>, vector<1x128x128xbf16>
    %69 = vector.shape_cast %68 : vector<1x128x128xbf16> to vector<128x128xbf16>
    %cst_27 = arith.constant dense<0.000000e+00> : vector<64x128xf32>
    %70 = tpu.matmul %67, %69, %cst_27 {dimension_numbers = #tpu.dot_dimension_numbers<[1], [0], [0], [1], [0, 0, 1, 1], [], []>} : vector<64x128xbf16>, vector<128x128xbf16>, vector<64x128xf32> -> vector<64x128xf32>
    %71 = arith.addf %50, %70 : vector<64x128xf32>
    %72 = vector.extract_strided_slice %28 {offsets = [0, 2], sizes = [64, 1], strides = [1, 1]} : vector<64x27xi32> to vector<64x1xi32>
    %73 = vector.shape_cast %72 : vector<64x1xi32> to vector<64xi32>
    %74 = vector.shape_cast %73 : vector<64xi32> to vector<64x1xi32>
    %c0_i32_28 = arith.constant 0 : i32
    %75 = vector.broadcast %c0_i32_28 : i32 to vector<64x1xi32>
    %76 = arith.maxsi %74, %75 : vector<64x1xi32>
    %77 = vector.shape_cast %76 : vector<64x1xi32> to vector<64x1xi32>
    %78 = vector.broadcast %77 : vector<64x1xi32> to vector<64x128xi32>
    %79 = vector.shape_cast %78 : vector<64x128xi32> to vector<64x128x1xi32>
    %80 = vector.shape_cast %79 : vector<64x128x1xi32> to vector<64x128xi32>
    %81 = tpu.dynamic_gather %27[%80] in [0] : vector<64x128xf32>, vector<64x128xi32> -> vector<64x128xf32>
    %c0_i32_29 = arith.constant 0 : i32
    %82 = vector.broadcast %c0_i32_29 : i32 to vector<64x1xi32>
    %83 = arith.cmpi sge, %74, %82 : vector<64x1xi32>
    %cst_30 = arith.constant 0.000000e+00 : f32
    %84 = vector.shape_cast %83 : vector<64x1xi1> to vector<64x1xi1>
    %85 = vector.broadcast %84 : vector<64x1xi1> to vector<64x128xi1>
    %86 = vector.broadcast %cst_30 : f32 to vector<64x128xf32>
    %87 = arith.select %85, %81, %86 : vector<64x128xi1>, vector<64x128xf32>
    %88 = arith.truncf %87 : vector<64x128xf32> to vector<64x128xbf16>
    %c2 = arith.constant 2 : index
    %c0_31 = arith.constant 0 : index
    %c0_32 = arith.constant 0 : index
    %89 = vector.load %arg5[%c2, %c0_31, %c0_32] : memref<27x128x128xbf16, #tpu.memory_space<vmem>>, vector<1x128x128xbf16>
    %90 = vector.shape_cast %89 : vector<1x128x128xbf16> to vector<128x128xbf16>
    %cst_33 = arith.constant dense<0.000000e+00> : vector<64x128xf32>
    %91 = tpu.matmul %88, %90, %cst_33 {dimension_numbers = #tpu.dot_dimension_numbers<[1], [0], [0], [1], [0, 0, 1, 1], [], []>} : vector<64x128xbf16>, vector<128x128xbf16>, vector<64x128xf32> -> vector<64x128xf32>
    %92 = arith.addf %71, %91 : vector<64x128xf32>
    %93 = vector.extract_strided_slice %28 {offsets = [0, 3], sizes = [64, 1], strides = [1, 1]} : vector<64x27xi32> to vector<64x1xi32>
    %94 = vector.shape_cast %93 : vector<64x1xi32> to vector<64xi32>
    %95 = vector.shape_cast %94 : vector<64xi32> to vector<64x1xi32>
    %c0_i32_34 = arith.constant 0 : i32
    %96 = vector.broadcast %c0_i32_34 : i32 to vector<64x1xi32>
    %97 = arith.maxsi %95, %96 : vector<64x1xi32>
    %98 = vector.shape_cast %97 : vector<64x1xi32> to vector<64x1xi32>
    %99 = vector.broadcast %98 : vector<64x1xi32> to vector<64x128xi32>
    %100 = vector.shape_cast %99 : vector<64x128xi32> to vector<64x128x1xi32>
    %101 = vector.shape_cast %100 : vector<64x128x1xi32> to vector<64x128xi32>
    %102 = tpu.dynamic_gather %27[%101] in [0] : vector<64x128xf32>, vector<64x128xi32> -> vector<64x128xf32>
    %c0_i32_35 = arith.constant 0 : i32
    %103 = vector.broadcast %c0_i32_35 : i32 to vector<64x1xi32>
    %104 = arith.cmpi sge, %95, %103 : vector<64x1xi32>
    %cst_36 = arith.constant 0.000000e+00 : f32
    %105 = vector.shape_cast %104 : vector<64x1xi1> to vector<64x1xi1>
    %106 = vector.broadcast %105 : vector<64x1xi1> to vector<64x128xi1>
    %107 = vector.broadcast %cst_36 : f32 to vector<64x128xf32>
    %108 = arith.select %106, %102, %107 : vector<64x128xi1>, vector<64x128xf32>
    %109 = arith.truncf %108 : vector<64x128xf32> to vector<64x128xbf16>
    %c3 = arith.constant 3 : index
    %c0_37 = arith.constant 0 : index
    %c0_38 = arith.constant 0 : index
    %110 = vector.load %arg5[%c3, %c0_37, %c0_38] : memref<27x128x128xbf16, #tpu.memory_space<vmem>>, vector<1x128x128xbf16>
    %111 = vector.shape_cast %110 : vector<1x128x128xbf16> to vector<128x128xbf16>
    %cst_39 = arith.constant dense<0.000000e+00> : vector<64x128xf32>
    %112 = tpu.matmul %109, %111, %cst_39 {dimension_numbers = #tpu.dot_dimension_numbers<[1], [0], [0], [1], [0, 0, 1, 1], [], []>} : vector<64x128xbf16>, vector<128x128xbf16>, vector<64x128xf32> -> vector<64x128xf32>
    %113 = arith.addf %92, %112 : vector<64x128xf32>
    %114 = vector.extract_strided_slice %28 {offsets = [0, 4], sizes = [64, 1], strides = [1, 1]} : vector<64x27xi32> to vector<64x1xi32>
    %115 = vector.shape_cast %114 : vector<64x1xi32> to vector<64xi32>
    %116 = vector.shape_cast %115 : vector<64xi32> to vector<64x1xi32>
    %c0_i32_40 = arith.constant 0 : i32
    %117 = vector.broadcast %c0_i32_40 : i32 to vector<64x1xi32>
    %118 = arith.maxsi %116, %117 : vector<64x1xi32>
    %119 = vector.shape_cast %118 : vector<64x1xi32> to vector<64x1xi32>
    %120 = vector.broadcast %119 : vector<64x1xi32> to vector<64x128xi32>
    %121 = vector.shape_cast %120 : vector<64x128xi32> to vector<64x128x1xi32>
    %122 = vector.shape_cast %121 : vector<64x128x1xi32> to vector<64x128xi32>
    %123 = tpu.dynamic_gather %27[%122] in [0] : vector<64x128xf32>, vector<64x128xi32> -> vector<64x128xf32>
    %c0_i32_41 = arith.constant 0 : i32
    %124 = vector.broadcast %c0_i32_41 : i32 to vector<64x1xi32>
    %125 = arith.cmpi sge, %116, %124 : vector<64x1xi32>
    %cst_42 = arith.constant 0.000000e+00 : f32
    %126 = vector.shape_cast %125 : vector<64x1xi1> to vector<64x1xi1>
    %127 = vector.broadcast %126 : vector<64x1xi1> to vector<64x128xi1>
    %128 = vector.broadcast %cst_42 : f32 to vector<64x128xf32>
    %129 = arith.select %127, %123, %128 : vector<64x128xi1>, vector<64x128xf32>
    %130 = arith.truncf %129 : vector<64x128xf32> to vector<64x128xbf16>
    %c4 = arith.constant 4 : index
    %c0_43 = arith.constant 0 : index
    %c0_44 = arith.constant 0 : index
    %131 = vector.load %arg5[%c4, %c0_43, %c0_44] : memref<27x128x128xbf16, #tpu.memory_space<vmem>>, vector<1x128x128xbf16>
    %132 = vector.shape_cast %131 : vector<1x128x128xbf16> to vector<128x128xbf16>
    %cst_45 = arith.constant dense<0.000000e+00> : vector<64x128xf32>
    %133 = tpu.matmul %130, %132, %cst_45 {dimension_numbers = #tpu.dot_dimension_numbers<[1], [0], [0], [1], [0, 0, 1, 1], [], []>} : vector<64x128xbf16>, vector<128x128xbf16>, vector<64x128xf32> -> vector<64x128xf32>
    %134 = arith.addf %113, %133 : vector<64x128xf32>
    %135 = vector.extract_strided_slice %28 {offsets = [0, 5], sizes = [64, 1], strides = [1, 1]} : vector<64x27xi32> to vector<64x1xi32>
    %136 = vector.shape_cast %135 : vector<64x1xi32> to vector<64xi32>
    %137 = vector.shape_cast %136 : vector<64xi32> to vector<64x1xi32>
    %c0_i32_46 = arith.constant 0 : i32
    %138 = vector.broadcast %c0_i32_46 : i32 to vector<64x1xi32>
    %139 = arith.maxsi %137, %138 : vector<64x1xi32>
    %140 = vector.shape_cast %139 : vector<64x1xi32> to vector<64x1xi32>
    %141 = vector.broadcast %140 : vector<64x1xi32> to vector<64x128xi32>
    %142 = vector.shape_cast %141 : vector<64x128xi32> to vector<64x128x1xi32>
    %143 = vector.shape_cast %142 : vector<64x128x1xi32> to vector<64x128xi32>
    %144 = tpu.dynamic_gather %27[%143] in [0] : vector<64x128xf32>, vector<64x128xi32> -> vector<64x128xf32>
    %c0_i32_47 = arith.constant 0 : i32
    %145 = vector.broadcast %c0_i32_47 : i32 to vector<64x1xi32>
    %146 = arith.cmpi sge, %137, %145 : vector<64x1xi32>
    %cst_48 = arith.constant 0.000000e+00 : f32
    %147 = vector.shape_cast %146 : vector<64x1xi1> to vector<64x1xi1>
    %148 = vector.broadcast %147 : vector<64x1xi1> to vector<64x128xi1>
    %149 = vector.broadcast %cst_48 : f32 to vector<64x128xf32>
    %150 = arith.select %148, %144, %149 : vector<64x128xi1>, vector<64x128xf32>
    %151 = arith.truncf %150 : vector<64x128xf32> to vector<64x128xbf16>
    %c5 = arith.constant 5 : index
    %c0_49 = arith.constant 0 : index
    %c0_50 = arith.constant 0 : index
    %152 = vector.load %arg5[%c5, %c0_49, %c0_50] : memref<27x128x128xbf16, #tpu.memory_space<vmem>>, vector<1x128x128xbf16>
    %153 = vector.shape_cast %152 : vector<1x128x128xbf16> to vector<128x128xbf16>
    %cst_51 = arith.constant dense<0.000000e+00> : vector<64x128xf32>
    %154 = tpu.matmul %151, %153, %cst_51 {dimension_numbers = #tpu.dot_dimension_numbers<[1], [0], [0], [1], [0, 0, 1, 1], [], []>} : vector<64x128xbf16>, vector<128x128xbf16>, vector<64x128xf32> -> vector<64x128xf32>
    %155 = arith.addf %134, %154 : vector<64x128xf32>
    %156 = vector.extract_strided_slice %28 {offsets = [0, 6], sizes = [64, 1], strides = [1, 1]} : vector<64x27xi32> to vector<64x1xi32>
    %157 = vector.shape_cast %156 : vector<64x1xi32> to vector<64xi32>
    %158 = vector.shape_cast %157 : vector<64xi32> to vector<64x1xi32>
    %c0_i32_52 = arith.constant 0 : i32
    %159 = vector.broadcast %c0_i32_52 : i32 to vector<64x1xi32>
    %160 = arith.maxsi %158, %159 : vector<64x1xi32>
    %161 = vector.shape_cast %160 : vector<64x1xi32> to vector<64x1xi32>
    %162 = vector.broadcast %161 : vector<64x1xi32> to vector<64x128xi32>
    %163 = vector.shape_cast %162 : vector<64x128xi32> to vector<64x128x1xi32>
    %164 = vector.shape_cast %163 : vector<64x128x1xi32> to vector<64x128xi32>
    %165 = tpu.dynamic_gather %27[%164] in [0] : vector<64x128xf32>, vector<64x128xi32> -> vector<64x128xf32>
    %c0_i32_53 = arith.constant 0 : i32
    %166 = vector.broadcast %c0_i32_53 : i32 to vector<64x1xi32>
    %167 = arith.cmpi sge, %158, %166 : vector<64x1xi32>
    %cst_54 = arith.constant 0.000000e+00 : f32
    %168 = vector.shape_cast %167 : vector<64x1xi1> to vector<64x1xi1>
    %169 = vector.broadcast %168 : vector<64x1xi1> to vector<64x128xi1>
    %170 = vector.broadcast %cst_54 : f32 to vector<64x128xf32>
    %171 = arith.select %169, %165, %170 : vector<64x128xi1>, vector<64x128xf32>
    %172 = arith.truncf %171 : vector<64x128xf32> to vector<64x128xbf16>
    %c6 = arith.constant 6 : index
    %c0_55 = arith.constant 0 : index
    %c0_56 = arith.constant 0 : index
    %173 = vector.load %arg5[%c6, %c0_55, %c0_56] : memref<27x128x128xbf16, #tpu.memory_space<vmem>>, vector<1x128x128xbf16>
    %174 = vector.shape_cast %173 : vector<1x128x128xbf16> to vector<128x128xbf16>
    %cst_57 = arith.constant dense<0.000000e+00> : vector<64x128xf32>
    %175 = tpu.matmul %172, %174, %cst_57 {dimension_numbers = #tpu.dot_dimension_numbers<[1], [0], [0], [1], [0, 0, 1, 1], [], []>} : vector<64x128xbf16>, vector<128x128xbf16>, vector<64x128xf32> -> vector<64x128xf32>
    %176 = arith.addf %155, %175 : vector<64x128xf32>
    %177 = vector.extract_strided_slice %28 {offsets = [0, 7], sizes = [64, 1], strides = [1, 1]} : vector<64x27xi32> to vector<64x1xi32>
    %178 = vector.shape_cast %177 : vector<64x1xi32> to vector<64xi32>
    %179 = vector.shape_cast %178 : vector<64xi32> to vector<64x1xi32>
    %c0_i32_58 = arith.constant 0 : i32
    %180 = vector.broadcast %c0_i32_58 : i32 to vector<64x1xi32>
    %181 = arith.maxsi %179, %180 : vector<64x1xi32>
    %182 = vector.shape_cast %181 : vector<64x1xi32> to vector<64x1xi32>
    %183 = vector.broadcast %182 : vector<64x1xi32> to vector<64x128xi32>
    %184 = vector.shape_cast %183 : vector<64x128xi32> to vector<64x128x1xi32>
    %185 = vector.shape_cast %184 : vector<64x128x1xi32> to vector<64x128xi32>
    %186 = tpu.dynamic_gather %27[%185] in [0] : vector<64x128xf32>, vector<64x128xi32> -> vector<64x128xf32>
    %c0_i32_59 = arith.constant 0 : i32
    %187 = vector.broadcast %c0_i32_59 : i32 to vector<64x1xi32>
    %188 = arith.cmpi sge, %179, %187 : vector<64x1xi32>
    %cst_60 = arith.constant 0.000000e+00 : f32
    %189 = vector.shape_cast %188 : vector<64x1xi1> to vector<64x1xi1>
    %190 = vector.broadcast %189 : vector<64x1xi1> to vector<64x128xi1>
    %191 = vector.broadcast %cst_60 : f32 to vector<64x128xf32>
    %192 = arith.select %190, %186, %191 : vector<64x128xi1>, vector<64x128xf32>
    %193 = arith.truncf %192 : vector<64x128xf32> to vector<64x128xbf16>
    %c7 = arith.constant 7 : index
    %c0_61 = arith.constant 0 : index
    %c0_62 = arith.constant 0 : index
    %194 = vector.load %arg5[%c7, %c0_61, %c0_62] : memref<27x128x128xbf16, #tpu.memory_space<vmem>>, vector<1x128x128xbf16>
    %195 = vector.shape_cast %194 : vector<1x128x128xbf16> to vector<128x128xbf16>
    %cst_63 = arith.constant dense<0.000000e+00> : vector<64x128xf32>
    %196 = tpu.matmul %193, %195, %cst_63 {dimension_numbers = #tpu.dot_dimension_numbers<[1], [0], [0], [1], [0, 0, 1, 1], [], []>} : vector<64x128xbf16>, vector<128x128xbf16>, vector<64x128xf32> -> vector<64x128xf32>
    %197 = arith.addf %176, %196 : vector<64x128xf32>
    %198 = vector.extract_strided_slice %28 {offsets = [0, 8], sizes = [64, 1], strides = [1, 1]} : vector<64x27xi32> to vector<64x1xi32>
    %199 = vector.shape_cast %198 : vector<64x1xi32> to vector<64xi32>
    %200 = vector.shape_cast %199 : vector<64xi32> to vector<64x1xi32>
    %c0_i32_64 = arith.constant 0 : i32
    %201 = vector.broadcast %c0_i32_64 : i32 to vector<64x1xi32>
    %202 = arith.maxsi %200, %201 : vector<64x1xi32>
    %203 = vector.shape_cast %202 : vector<64x1xi32> to vector<64x1xi32>
    %204 = vector.broadcast %203 : vector<64x1xi32> to vector<64x128xi32>
    %205 = vector.shape_cast %204 : vector<64x128xi32> to vector<64x128x1xi32>
    %206 = vector.shape_cast %205 : vector<64x128x1xi32> to vector<64x128xi32>
    %207 = tpu.dynamic_gather %27[%206] in [0] : vector<64x128xf32>, vector<64x128xi32> -> vector<64x128xf32>
    %c0_i32_65 = arith.constant 0 : i32
    %208 = vector.broadcast %c0_i32_65 : i32 to vector<64x1xi32>
    %209 = arith.cmpi sge, %200, %208 : vector<64x1xi32>
    %cst_66 = arith.constant 0.000000e+00 : f32
    %210 = vector.shape_cast %209 : vector<64x1xi1> to vector<64x1xi1>
    %211 = vector.broadcast %210 : vector<64x1xi1> to vector<64x128xi1>
    %212 = vector.broadcast %cst_66 : f32 to vector<64x128xf32>
    %213 = arith.select %211, %207, %212 : vector<64x128xi1>, vector<64x128xf32>
    %214 = arith.truncf %213 : vector<64x128xf32> to vector<64x128xbf16>
    %c8 = arith.constant 8 : index
    %c0_67 = arith.constant 0 : index
    %c0_68 = arith.constant 0 : index
    %215 = vector.load %arg5[%c8, %c0_67, %c0_68] : memref<27x128x128xbf16, #tpu.memory_space<vmem>>, vector<1x128x128xbf16>
    %216 = vector.shape_cast %215 : vector<1x128x128xbf16> to vector<128x128xbf16>
    %cst_69 = arith.constant dense<0.000000e+00> : vector<64x128xf32>
    %217 = tpu.matmul %214, %216, %cst_69 {dimension_numbers = #tpu.dot_dimension_numbers<[1], [0], [0], [1], [0, 0, 1, 1], [], []>} : vector<64x128xbf16>, vector<128x128xbf16>, vector<64x128xf32> -> vector<64x128xf32>
    %218 = arith.addf %197, %217 : vector<64x128xf32>
    %219 = vector.extract_strided_slice %28 {offsets = [0, 9], sizes = [64, 1], strides = [1, 1]} : vector<64x27xi32> to vector<64x1xi32>
    %220 = vector.shape_cast %219 : vector<64x1xi32> to vector<64xi32>
    %221 = vector.shape_cast %220 : vector<64xi32> to vector<64x1xi32>
    %c0_i32_70 = arith.constant 0 : i32
    %222 = vector.broadcast %c0_i32_70 : i32 to vector<64x1xi32>
    %223 = arith.maxsi %221, %222 : vector<64x1xi32>
    %224 = vector.shape_cast %223 : vector<64x1xi32> to vector<64x1xi32>
    %225 = vector.broadcast %224 : vector<64x1xi32> to vector<64x128xi32>
    %226 = vector.shape_cast %225 : vector<64x128xi32> to vector<64x128x1xi32>
    %227 = vector.shape_cast %226 : vector<64x128x1xi32> to vector<64x128xi32>
    %228 = tpu.dynamic_gather %27[%227] in [0] : vector<64x128xf32>, vector<64x128xi32> -> vector<64x128xf32>
    %c0_i32_71 = arith.constant 0 : i32
    %229 = vector.broadcast %c0_i32_71 : i32 to vector<64x1xi32>
    %230 = arith.cmpi sge, %221, %229 : vector<64x1xi32>
    %cst_72 = arith.constant 0.000000e+00 : f32
    %231 = vector.shape_cast %230 : vector<64x1xi1> to vector<64x1xi1>
    %232 = vector.broadcast %231 : vector<64x1xi1> to vector<64x128xi1>
    %233 = vector.broadcast %cst_72 : f32 to vector<64x128xf32>
    %234 = arith.select %232, %228, %233 : vector<64x128xi1>, vector<64x128xf32>
    %235 = arith.truncf %234 : vector<64x128xf32> to vector<64x128xbf16>
    %c9 = arith.constant 9 : index
    %c0_73 = arith.constant 0 : index
    %c0_74 = arith.constant 0 : index
    %236 = vector.load %arg5[%c9, %c0_73, %c0_74] : memref<27x128x128xbf16, #tpu.memory_space<vmem>>, vector<1x128x128xbf16>
    %237 = vector.shape_cast %236 : vector<1x128x128xbf16> to vector<128x128xbf16>
    %cst_75 = arith.constant dense<0.000000e+00> : vector<64x128xf32>
    %238 = tpu.matmul %235, %237, %cst_75 {dimension_numbers = #tpu.dot_dimension_numbers<[1], [0], [0], [1], [0, 0, 1, 1], [], []>} : vector<64x128xbf16>, vector<128x128xbf16>, vector<64x128xf32> -> vector<64x128xf32>
    %239 = arith.addf %218, %238 : vector<64x128xf32>
    %240 = vector.extract_strided_slice %28 {offsets = [0, 10], sizes = [64, 1], strides = [1, 1]} : vector<64x27xi32> to vector<64x1xi32>
    %241 = vector.shape_cast %240 : vector<64x1xi32> to vector<64xi32>
    %242 = vector.shape_cast %241 : vector<64xi32> to vector<64x1xi32>
    %c0_i32_76 = arith.constant 0 : i32
    %243 = vector.broadcast %c0_i32_76 : i32 to vector<64x1xi32>
    %244 = arith.maxsi %242, %243 : vector<64x1xi32>
    %245 = vector.shape_cast %244 : vector<64x1xi32> to vector<64x1xi32>
    %246 = vector.broadcast %245 : vector<64x1xi32> to vector<64x128xi32>
    %247 = vector.shape_cast %246 : vector<64x128xi32> to vector<64x128x1xi32>
    %248 = vector.shape_cast %247 : vector<64x128x1xi32> to vector<64x128xi32>
    %249 = tpu.dynamic_gather %27[%248] in [0] : vector<64x128xf32>, vector<64x128xi32> -> vector<64x128xf32>
    %c0_i32_77 = arith.constant 0 : i32
    %250 = vector.broadcast %c0_i32_77 : i32 to vector<64x1xi32>
    %251 = arith.cmpi sge, %242, %250 : vector<64x1xi32>
    %cst_78 = arith.constant 0.000000e+00 : f32
    %252 = vector.shape_cast %251 : vector<64x1xi1> to vector<64x1xi1>
    %253 = vector.broadcast %252 : vector<64x1xi1> to vector<64x128xi1>
    %254 = vector.broadcast %cst_78 : f32 to vector<64x128xf32>
    %255 = arith.select %253, %249, %254 : vector<64x128xi1>, vector<64x128xf32>
    %256 = arith.truncf %255 : vector<64x128xf32> to vector<64x128xbf16>
    %c10 = arith.constant 10 : index
    %c0_79 = arith.constant 0 : index
    %c0_80 = arith.constant 0 : index
    %257 = vector.load %arg5[%c10, %c0_79, %c0_80] : memref<27x128x128xbf16, #tpu.memory_space<vmem>>, vector<1x128x128xbf16>
    %258 = vector.shape_cast %257 : vector<1x128x128xbf16> to vector<128x128xbf16>
    %cst_81 = arith.constant dense<0.000000e+00> : vector<64x128xf32>
    %259 = tpu.matmul %256, %258, %cst_81 {dimension_numbers = #tpu.dot_dimension_numbers<[1], [0], [0], [1], [0, 0, 1, 1], [], []>} : vector<64x128xbf16>, vector<128x128xbf16>, vector<64x128xf32> -> vector<64x128xf32>
    %260 = arith.addf %239, %259 : vector<64x128xf32>
    %261 = vector.extract_strided_slice %28 {offsets = [0, 11], sizes = [64, 1], strides = [1, 1]} : vector<64x27xi32> to vector<64x1xi32>
    %262 = vector.shape_cast %261 : vector<64x1xi32> to vector<64xi32>
    %263 = vector.shape_cast %262 : vector<64xi32> to vector<64x1xi32>
    %c0_i32_82 = arith.constant 0 : i32
    %264 = vector.broadcast %c0_i32_82 : i32 to vector<64x1xi32>
    %265 = arith.maxsi %263, %264 : vector<64x1xi32>
    %266 = vector.shape_cast %265 : vector<64x1xi32> to vector<64x1xi32>
    %267 = vector.broadcast %266 : vector<64x1xi32> to vector<64x128xi32>
    %268 = vector.shape_cast %267 : vector<64x128xi32> to vector<64x128x1xi32>
    %269 = vector.shape_cast %268 : vector<64x128x1xi32> to vector<64x128xi32>
    %270 = tpu.dynamic_gather %27[%269] in [0] : vector<64x128xf32>, vector<64x128xi32> -> vector<64x128xf32>
    %c0_i32_83 = arith.constant 0 : i32
    %271 = vector.broadcast %c0_i32_83 : i32 to vector<64x1xi32>
    %272 = arith.cmpi sge, %263, %271 : vector<64x1xi32>
    %cst_84 = arith.constant 0.000000e+00 : f32
    %273 = vector.shape_cast %272 : vector<64x1xi1> to vector<64x1xi1>
    %274 = vector.broadcast %273 : vector<64x1xi1> to vector<64x128xi1>
    %275 = vector.broadcast %cst_84 : f32 to vector<64x128xf32>
    %276 = arith.select %274, %270, %275 : vector<64x128xi1>, vector<64x128xf32>
    %277 = arith.truncf %276 : vector<64x128xf32> to vector<64x128xbf16>
    %c11 = arith.constant 11 : index
    %c0_85 = arith.constant 0 : index
    %c0_86 = arith.constant 0 : index
    %278 = vector.load %arg5[%c11, %c0_85, %c0_86] : memref<27x128x128xbf16, #tpu.memory_space<vmem>>, vector<1x128x128xbf16>
    %279 = vector.shape_cast %278 : vector<1x128x128xbf16> to vector<128x128xbf16>
    %cst_87 = arith.constant dense<0.000000e+00> : vector<64x128xf32>
    %280 = tpu.matmul %277, %279, %cst_87 {dimension_numbers = #tpu.dot_dimension_numbers<[1], [0], [0], [1], [0, 0, 1, 1], [], []>} : vector<64x128xbf16>, vector<128x128xbf16>, vector<64x128xf32> -> vector<64x128xf32>
    %281 = arith.addf %260, %280 : vector<64x128xf32>
    %282 = vector.extract_strided_slice %28 {offsets = [0, 12], sizes = [64, 1], strides = [1, 1]} : vector<64x27xi32> to vector<64x1xi32>
    %283 = vector.shape_cast %282 : vector<64x1xi32> to vector<64xi32>
    %284 = vector.shape_cast %283 : vector<64xi32> to vector<64x1xi32>
    %c0_i32_88 = arith.constant 0 : i32
    %285 = vector.broadcast %c0_i32_88 : i32 to vector<64x1xi32>
    %286 = arith.maxsi %284, %285 : vector<64x1xi32>
    %287 = vector.shape_cast %286 : vector<64x1xi32> to vector<64x1xi32>
    %288 = vector.broadcast %287 : vector<64x1xi32> to vector<64x128xi32>
    %289 = vector.shape_cast %288 : vector<64x128xi32> to vector<64x128x1xi32>
    %290 = vector.shape_cast %289 : vector<64x128x1xi32> to vector<64x128xi32>
    %291 = tpu.dynamic_gather %27[%290] in [0] : vector<64x128xf32>, vector<64x128xi32> -> vector<64x128xf32>
    %c0_i32_89 = arith.constant 0 : i32
    %292 = vector.broadcast %c0_i32_89 : i32 to vector<64x1xi32>
    %293 = arith.cmpi sge, %284, %292 : vector<64x1xi32>
    %cst_90 = arith.constant 0.000000e+00 : f32
    %294 = vector.shape_cast %293 : vector<64x1xi1> to vector<64x1xi1>
    %295 = vector.broadcast %294 : vector<64x1xi1> to vector<64x128xi1>
    %296 = vector.broadcast %cst_90 : f32 to vector<64x128xf32>
    %297 = arith.select %295, %291, %296 : vector<64x128xi1>, vector<64x128xf32>
    %298 = arith.truncf %297 : vector<64x128xf32> to vector<64x128xbf16>
    %c12 = arith.constant 12 : index
    %c0_91 = arith.constant 0 : index
    %c0_92 = arith.constant 0 : index
    %299 = vector.load %arg5[%c12, %c0_91, %c0_92] : memref<27x128x128xbf16, #tpu.memory_space<vmem>>, vector<1x128x128xbf16>
    %300 = vector.shape_cast %299 : vector<1x128x128xbf16> to vector<128x128xbf16>
    %cst_93 = arith.constant dense<0.000000e+00> : vector<64x128xf32>
    %301 = tpu.matmul %298, %300, %cst_93 {dimension_numbers = #tpu.dot_dimension_numbers<[1], [0], [0], [1], [0, 0, 1, 1], [], []>} : vector<64x128xbf16>, vector<128x128xbf16>, vector<64x128xf32> -> vector<64x128xf32>
    %302 = arith.addf %281, %301 : vector<64x128xf32>
    %303 = vector.extract_strided_slice %28 {offsets = [0, 13], sizes = [64, 1], strides = [1, 1]} : vector<64x27xi32> to vector<64x1xi32>
    %304 = vector.shape_cast %303 : vector<64x1xi32> to vector<64xi32>
    %305 = vector.shape_cast %304 : vector<64xi32> to vector<64x1xi32>
    %c0_i32_94 = arith.constant 0 : i32
    %306 = vector.broadcast %c0_i32_94 : i32 to vector<64x1xi32>
    %307 = arith.maxsi %305, %306 : vector<64x1xi32>
    %308 = vector.shape_cast %307 : vector<64x1xi32> to vector<64x1xi32>
    %309 = vector.broadcast %308 : vector<64x1xi32> to vector<64x128xi32>
    %310 = vector.shape_cast %309 : vector<64x128xi32> to vector<64x128x1xi32>
    %311 = vector.shape_cast %310 : vector<64x128x1xi32> to vector<64x128xi32>
    %312 = tpu.dynamic_gather %27[%311] in [0] : vector<64x128xf32>, vector<64x128xi32> -> vector<64x128xf32>
    %c0_i32_95 = arith.constant 0 : i32
    %313 = vector.broadcast %c0_i32_95 : i32 to vector<64x1xi32>
    %314 = arith.cmpi sge, %305, %313 : vector<64x1xi32>
    %cst_96 = arith.constant 0.000000e+00 : f32
    %315 = vector.shape_cast %314 : vector<64x1xi1> to vector<64x1xi1>
    %316 = vector.broadcast %315 : vector<64x1xi1> to vector<64x128xi1>
    %317 = vector.broadcast %cst_96 : f32 to vector<64x128xf32>
    %318 = arith.select %316, %312, %317 : vector<64x128xi1>, vector<64x128xf32>
    %319 = arith.truncf %318 : vector<64x128xf32> to vector<64x128xbf16>
    %c13 = arith.constant 13 : index
    %c0_97 = arith.constant 0 : index
    %c0_98 = arith.constant 0 : index
    %320 = vector.load %arg5[%c13, %c0_97, %c0_98] : memref<27x128x128xbf16, #tpu.memory_space<vmem>>, vector<1x128x128xbf16>
    %321 = vector.shape_cast %320 : vector<1x128x128xbf16> to vector<128x128xbf16>
    %cst_99 = arith.constant dense<0.000000e+00> : vector<64x128xf32>
    %322 = tpu.matmul %319, %321, %cst_99 {dimension_numbers = #tpu.dot_dimension_numbers<[1], [0], [0], [1], [0, 0, 1, 1], [], []>} : vector<64x128xbf16>, vector<128x128xbf16>, vector<64x128xf32> -> vector<64x128xf32>
    %323 = arith.addf %302, %322 : vector<64x128xf32>
    %324 = vector.extract_strided_slice %28 {offsets = [0, 14], sizes = [64, 1], strides = [1, 1]} : vector<64x27xi32> to vector<64x1xi32>
    %325 = vector.shape_cast %324 : vector<64x1xi32> to vector<64xi32>
    %326 = vector.shape_cast %325 : vector<64xi32> to vector<64x1xi32>
    %c0_i32_100 = arith.constant 0 : i32
    %327 = vector.broadcast %c0_i32_100 : i32 to vector<64x1xi32>
    %328 = arith.maxsi %326, %327 : vector<64x1xi32>
    %329 = vector.shape_cast %328 : vector<64x1xi32> to vector<64x1xi32>
    %330 = vector.broadcast %329 : vector<64x1xi32> to vector<64x128xi32>
    %331 = vector.shape_cast %330 : vector<64x128xi32> to vector<64x128x1xi32>
    %332 = vector.shape_cast %331 : vector<64x128x1xi32> to vector<64x128xi32>
    %333 = tpu.dynamic_gather %27[%332] in [0] : vector<64x128xf32>, vector<64x128xi32> -> vector<64x128xf32>
    %c0_i32_101 = arith.constant 0 : i32
    %334 = vector.broadcast %c0_i32_101 : i32 to vector<64x1xi32>
    %335 = arith.cmpi sge, %326, %334 : vector<64x1xi32>
    %cst_102 = arith.constant 0.000000e+00 : f32
    %336 = vector.shape_cast %335 : vector<64x1xi1> to vector<64x1xi1>
    %337 = vector.broadcast %336 : vector<64x1xi1> to vector<64x128xi1>
    %338 = vector.broadcast %cst_102 : f32 to vector<64x128xf32>
    %339 = arith.select %337, %333, %338 : vector<64x128xi1>, vector<64x128xf32>
    %340 = arith.truncf %339 : vector<64x128xf32> to vector<64x128xbf16>
    %c14 = arith.constant 14 : index
    %c0_103 = arith.constant 0 : index
    %c0_104 = arith.constant 0 : index
    %341 = vector.load %arg5[%c14, %c0_103, %c0_104] : memref<27x128x128xbf16, #tpu.memory_space<vmem>>, vector<1x128x128xbf16>
    %342 = vector.shape_cast %341 : vector<1x128x128xbf16> to vector<128x128xbf16>
    %cst_105 = arith.constant dense<0.000000e+00> : vector<64x128xf32>
    %343 = tpu.matmul %340, %342, %cst_105 {dimension_numbers = #tpu.dot_dimension_numbers<[1], [0], [0], [1], [0, 0, 1, 1], [], []>} : vector<64x128xbf16>, vector<128x128xbf16>, vector<64x128xf32> -> vector<64x128xf32>
    %344 = arith.addf %323, %343 : vector<64x128xf32>
    %345 = vector.extract_strided_slice %28 {offsets = [0, 15], sizes = [64, 1], strides = [1, 1]} : vector<64x27xi32> to vector<64x1xi32>
    %346 = vector.shape_cast %345 : vector<64x1xi32> to vector<64xi32>
    %347 = vector.shape_cast %346 : vector<64xi32> to vector<64x1xi32>
    %c0_i32_106 = arith.constant 0 : i32
    %348 = vector.broadcast %c0_i32_106 : i32 to vector<64x1xi32>
    %349 = arith.maxsi %347, %348 : vector<64x1xi32>
    %350 = vector.shape_cast %349 : vector<64x1xi32> to vector<64x1xi32>
    %351 = vector.broadcast %350 : vector<64x1xi32> to vector<64x128xi32>
    %352 = vector.shape_cast %351 : vector<64x128xi32> to vector<64x128x1xi32>
    %353 = vector.shape_cast %352 : vector<64x128x1xi32> to vector<64x128xi32>
    %354 = tpu.dynamic_gather %27[%353] in [0] : vector<64x128xf32>, vector<64x128xi32> -> vector<64x128xf32>
    %c0_i32_107 = arith.constant 0 : i32
    %355 = vector.broadcast %c0_i32_107 : i32 to vector<64x1xi32>
    %356 = arith.cmpi sge, %347, %355 : vector<64x1xi32>
    %cst_108 = arith.constant 0.000000e+00 : f32
    %357 = vector.shape_cast %356 : vector<64x1xi1> to vector<64x1xi1>
    %358 = vector.broadcast %357 : vector<64x1xi1> to vector<64x128xi1>
    %359 = vector.broadcast %cst_108 : f32 to vector<64x128xf32>
    %360 = arith.select %358, %354, %359 : vector<64x128xi1>, vector<64x128xf32>
    %361 = arith.truncf %360 : vector<64x128xf32> to vector<64x128xbf16>
    %c15 = arith.constant 15 : index
    %c0_109 = arith.constant 0 : index
    %c0_110 = arith.constant 0 : index
    %362 = vector.load %arg5[%c15, %c0_109, %c0_110] : memref<27x128x128xbf16, #tpu.memory_space<vmem>>, vector<1x128x128xbf16>
    %363 = vector.shape_cast %362 : vector<1x128x128xbf16> to vector<128x128xbf16>
    %cst_111 = arith.constant dense<0.000000e+00> : vector<64x128xf32>
    %364 = tpu.matmul %361, %363, %cst_111 {dimension_numbers = #tpu.dot_dimension_numbers<[1], [0], [0], [1], [0, 0, 1, 1], [], []>} : vector<64x128xbf16>, vector<128x128xbf16>, vector<64x128xf32> -> vector<64x128xf32>
    %365 = arith.addf %344, %364 : vector<64x128xf32>
    %366 = vector.extract_strided_slice %28 {offsets = [0, 16], sizes = [64, 1], strides = [1, 1]} : vector<64x27xi32> to vector<64x1xi32>
    %367 = vector.shape_cast %366 : vector<64x1xi32> to vector<64xi32>
    %368 = vector.shape_cast %367 : vector<64xi32> to vector<64x1xi32>
    %c0_i32_112 = arith.constant 0 : i32
    %369 = vector.broadcast %c0_i32_112 : i32 to vector<64x1xi32>
    %370 = arith.maxsi %368, %369 : vector<64x1xi32>
    %371 = vector.shape_cast %370 : vector<64x1xi32> to vector<64x1xi32>
    %372 = vector.broadcast %371 : vector<64x1xi32> to vector<64x128xi32>
    %373 = vector.shape_cast %372 : vector<64x128xi32> to vector<64x128x1xi32>
    %374 = vector.shape_cast %373 : vector<64x128x1xi32> to vector<64x128xi32>
    %375 = tpu.dynamic_gather %27[%374] in [0] : vector<64x128xf32>, vector<64x128xi32> -> vector<64x128xf32>
    %c0_i32_113 = arith.constant 0 : i32
    %376 = vector.broadcast %c0_i32_113 : i32 to vector<64x1xi32>
    %377 = arith.cmpi sge, %368, %376 : vector<64x1xi32>
    %cst_114 = arith.constant 0.000000e+00 : f32
    %378 = vector.shape_cast %377 : vector<64x1xi1> to vector<64x1xi1>
    %379 = vector.broadcast %378 : vector<64x1xi1> to vector<64x128xi1>
    %380 = vector.broadcast %cst_114 : f32 to vector<64x128xf32>
    %381 = arith.select %379, %375, %380 : vector<64x128xi1>, vector<64x128xf32>
    %382 = arith.truncf %381 : vector<64x128xf32> to vector<64x128xbf16>
    %c16 = arith.constant 16 : index
    %c0_115 = arith.constant 0 : index
    %c0_116 = arith.constant 0 : index
    %383 = vector.load %arg5[%c16, %c0_115, %c0_116] : memref<27x128x128xbf16, #tpu.memory_space<vmem>>, vector<1x128x128xbf16>
    %384 = vector.shape_cast %383 : vector<1x128x128xbf16> to vector<128x128xbf16>
    %cst_117 = arith.constant dense<0.000000e+00> : vector<64x128xf32>
    %385 = tpu.matmul %382, %384, %cst_117 {dimension_numbers = #tpu.dot_dimension_numbers<[1], [0], [0], [1], [0, 0, 1, 1], [], []>} : vector<64x128xbf16>, vector<128x128xbf16>, vector<64x128xf32> -> vector<64x128xf32>
    %386 = arith.addf %365, %385 : vector<64x128xf32>
    %387 = vector.extract_strided_slice %28 {offsets = [0, 17], sizes = [64, 1], strides = [1, 1]} : vector<64x27xi32> to vector<64x1xi32>
    %388 = vector.shape_cast %387 : vector<64x1xi32> to vector<64xi32>
    %389 = vector.shape_cast %388 : vector<64xi32> to vector<64x1xi32>
    %c0_i32_118 = arith.constant 0 : i32
    %390 = vector.broadcast %c0_i32_118 : i32 to vector<64x1xi32>
    %391 = arith.maxsi %389, %390 : vector<64x1xi32>
    %392 = vector.shape_cast %391 : vector<64x1xi32> to vector<64x1xi32>
    %393 = vector.broadcast %392 : vector<64x1xi32> to vector<64x128xi32>
    %394 = vector.shape_cast %393 : vector<64x128xi32> to vector<64x128x1xi32>
    %395 = vector.shape_cast %394 : vector<64x128x1xi32> to vector<64x128xi32>
    %396 = tpu.dynamic_gather %27[%395] in [0] : vector<64x128xf32>, vector<64x128xi32> -> vector<64x128xf32>
    %c0_i32_119 = arith.constant 0 : i32
    %397 = vector.broadcast %c0_i32_119 : i32 to vector<64x1xi32>
    %398 = arith.cmpi sge, %389, %397 : vector<64x1xi32>
    %cst_120 = arith.constant 0.000000e+00 : f32
    %399 = vector.shape_cast %398 : vector<64x1xi1> to vector<64x1xi1>
    %400 = vector.broadcast %399 : vector<64x1xi1> to vector<64x128xi1>
    %401 = vector.broadcast %cst_120 : f32 to vector<64x128xf32>
    %402 = arith.select %400, %396, %401 : vector<64x128xi1>, vector<64x128xf32>
    %403 = arith.truncf %402 : vector<64x128xf32> to vector<64x128xbf16>
    %c17 = arith.constant 17 : index
    %c0_121 = arith.constant 0 : index
    %c0_122 = arith.constant 0 : index
    %404 = vector.load %arg5[%c17, %c0_121, %c0_122] : memref<27x128x128xbf16, #tpu.memory_space<vmem>>, vector<1x128x128xbf16>
    %405 = vector.shape_cast %404 : vector<1x128x128xbf16> to vector<128x128xbf16>
    %cst_123 = arith.constant dense<0.000000e+00> : vector<64x128xf32>
    %406 = tpu.matmul %403, %405, %cst_123 {dimension_numbers = #tpu.dot_dimension_numbers<[1], [0], [0], [1], [0, 0, 1, 1], [], []>} : vector<64x128xbf16>, vector<128x128xbf16>, vector<64x128xf32> -> vector<64x128xf32>
    %407 = arith.addf %386, %406 : vector<64x128xf32>
    %408 = vector.extract_strided_slice %28 {offsets = [0, 18], sizes = [64, 1], strides = [1, 1]} : vector<64x27xi32> to vector<64x1xi32>
    %409 = vector.shape_cast %408 : vector<64x1xi32> to vector<64xi32>
    %410 = vector.shape_cast %409 : vector<64xi32> to vector<64x1xi32>
    %c0_i32_124 = arith.constant 0 : i32
    %411 = vector.broadcast %c0_i32_124 : i32 to vector<64x1xi32>
    %412 = arith.maxsi %410, %411 : vector<64x1xi32>
    %413 = vector.shape_cast %412 : vector<64x1xi32> to vector<64x1xi32>
    %414 = vector.broadcast %413 : vector<64x1xi32> to vector<64x128xi32>
    %415 = vector.shape_cast %414 : vector<64x128xi32> to vector<64x128x1xi32>
    %416 = vector.shape_cast %415 : vector<64x128x1xi32> to vector<64x128xi32>
    %417 = tpu.dynamic_gather %27[%416] in [0] : vector<64x128xf32>, vector<64x128xi32> -> vector<64x128xf32>
    %c0_i32_125 = arith.constant 0 : i32
    %418 = vector.broadcast %c0_i32_125 : i32 to vector<64x1xi32>
    %419 = arith.cmpi sge, %410, %418 : vector<64x1xi32>
    %cst_126 = arith.constant 0.000000e+00 : f32
    %420 = vector.shape_cast %419 : vector<64x1xi1> to vector<64x1xi1>
    %421 = vector.broadcast %420 : vector<64x1xi1> to vector<64x128xi1>
    %422 = vector.broadcast %cst_126 : f32 to vector<64x128xf32>
    %423 = arith.select %421, %417, %422 : vector<64x128xi1>, vector<64x128xf32>
    %424 = arith.truncf %423 : vector<64x128xf32> to vector<64x128xbf16>
    %c18 = arith.constant 18 : index
    %c0_127 = arith.constant 0 : index
    %c0_128 = arith.constant 0 : index
    %425 = vector.load %arg5[%c18, %c0_127, %c0_128] : memref<27x128x128xbf16, #tpu.memory_space<vmem>>, vector<1x128x128xbf16>
    %426 = vector.shape_cast %425 : vector<1x128x128xbf16> to vector<128x128xbf16>
    %cst_129 = arith.constant dense<0.000000e+00> : vector<64x128xf32>
    %427 = tpu.matmul %424, %426, %cst_129 {dimension_numbers = #tpu.dot_dimension_numbers<[1], [0], [0], [1], [0, 0, 1, 1], [], []>} : vector<64x128xbf16>, vector<128x128xbf16>, vector<64x128xf32> -> vector<64x128xf32>
    %428 = arith.addf %407, %427 : vector<64x128xf32>
    %429 = vector.extract_strided_slice %28 {offsets = [0, 19], sizes = [64, 1], strides = [1, 1]} : vector<64x27xi32> to vector<64x1xi32>
    %430 = vector.shape_cast %429 : vector<64x1xi32> to vector<64xi32>
    %431 = vector.shape_cast %430 : vector<64xi32> to vector<64x1xi32>
    %c0_i32_130 = arith.constant 0 : i32
    %432 = vector.broadcast %c0_i32_130 : i32 to vector<64x1xi32>
    %433 = arith.maxsi %431, %432 : vector<64x1xi32>
    %434 = vector.shape_cast %433 : vector<64x1xi32> to vector<64x1xi32>
    %435 = vector.broadcast %434 : vector<64x1xi32> to vector<64x128xi32>
    %436 = vector.shape_cast %435 : vector<64x128xi32> to vector<64x128x1xi32>
    %437 = vector.shape_cast %436 : vector<64x128x1xi32> to vector<64x128xi32>
    %438 = tpu.dynamic_gather %27[%437] in [0] : vector<64x128xf32>, vector<64x128xi32> -> vector<64x128xf32>
    %c0_i32_131 = arith.constant 0 : i32
    %439 = vector.broadcast %c0_i32_131 : i32 to vector<64x1xi32>
    %440 = arith.cmpi sge, %431, %439 : vector<64x1xi32>
    %cst_132 = arith.constant 0.000000e+00 : f32
    %441 = vector.shape_cast %440 : vector<64x1xi1> to vector<64x1xi1>
    %442 = vector.broadcast %441 : vector<64x1xi1> to vector<64x128xi1>
    %443 = vector.broadcast %cst_132 : f32 to vector<64x128xf32>
    %444 = arith.select %442, %438, %443 : vector<64x128xi1>, vector<64x128xf32>
    %445 = arith.truncf %444 : vector<64x128xf32> to vector<64x128xbf16>
    %c19 = arith.constant 19 : index
    %c0_133 = arith.constant 0 : index
    %c0_134 = arith.constant 0 : index
    %446 = vector.load %arg5[%c19, %c0_133, %c0_134] : memref<27x128x128xbf16, #tpu.memory_space<vmem>>, vector<1x128x128xbf16>
    %447 = vector.shape_cast %446 : vector<1x128x128xbf16> to vector<128x128xbf16>
    %cst_135 = arith.constant dense<0.000000e+00> : vector<64x128xf32>
    %448 = tpu.matmul %445, %447, %cst_135 {dimension_numbers = #tpu.dot_dimension_numbers<[1], [0], [0], [1], [0, 0, 1, 1], [], []>} : vector<64x128xbf16>, vector<128x128xbf16>, vector<64x128xf32> -> vector<64x128xf32>
    %449 = arith.addf %428, %448 : vector<64x128xf32>
    %450 = vector.extract_strided_slice %28 {offsets = [0, 20], sizes = [64, 1], strides = [1, 1]} : vector<64x27xi32> to vector<64x1xi32>
    %451 = vector.shape_cast %450 : vector<64x1xi32> to vector<64xi32>
    %452 = vector.shape_cast %451 : vector<64xi32> to vector<64x1xi32>
    %c0_i32_136 = arith.constant 0 : i32
    %453 = vector.broadcast %c0_i32_136 : i32 to vector<64x1xi32>
    %454 = arith.maxsi %452, %453 : vector<64x1xi32>
    %455 = vector.shape_cast %454 : vector<64x1xi32> to vector<64x1xi32>
    %456 = vector.broadcast %455 : vector<64x1xi32> to vector<64x128xi32>
    %457 = vector.shape_cast %456 : vector<64x128xi32> to vector<64x128x1xi32>
    %458 = vector.shape_cast %457 : vector<64x128x1xi32> to vector<64x128xi32>
    %459 = tpu.dynamic_gather %27[%458] in [0] : vector<64x128xf32>, vector<64x128xi32> -> vector<64x128xf32>
    %c0_i32_137 = arith.constant 0 : i32
    %460 = vector.broadcast %c0_i32_137 : i32 to vector<64x1xi32>
    %461 = arith.cmpi sge, %452, %460 : vector<64x1xi32>
    %cst_138 = arith.constant 0.000000e+00 : f32
    %462 = vector.shape_cast %461 : vector<64x1xi1> to vector<64x1xi1>
    %463 = vector.broadcast %462 : vector<64x1xi1> to vector<64x128xi1>
    %464 = vector.broadcast %cst_138 : f32 to vector<64x128xf32>
    %465 = arith.select %463, %459, %464 : vector<64x128xi1>, vector<64x128xf32>
    %466 = arith.truncf %465 : vector<64x128xf32> to vector<64x128xbf16>
    %c20 = arith.constant 20 : index
    %c0_139 = arith.constant 0 : index
    %c0_140 = arith.constant 0 : index
    %467 = vector.load %arg5[%c20, %c0_139, %c0_140] : memref<27x128x128xbf16, #tpu.memory_space<vmem>>, vector<1x128x128xbf16>
    %468 = vector.shape_cast %467 : vector<1x128x128xbf16> to vector<128x128xbf16>
    %cst_141 = arith.constant dense<0.000000e+00> : vector<64x128xf32>
    %469 = tpu.matmul %466, %468, %cst_141 {dimension_numbers = #tpu.dot_dimension_numbers<[1], [0], [0], [1], [0, 0, 1, 1], [], []>} : vector<64x128xbf16>, vector<128x128xbf16>, vector<64x128xf32> -> vector<64x128xf32>
    %470 = arith.addf %449, %469 : vector<64x128xf32>
    %471 = vector.extract_strided_slice %28 {offsets = [0, 21], sizes = [64, 1], strides = [1, 1]} : vector<64x27xi32> to vector<64x1xi32>
    %472 = vector.shape_cast %471 : vector<64x1xi32> to vector<64xi32>
    %473 = vector.shape_cast %472 : vector<64xi32> to vector<64x1xi32>
    %c0_i32_142 = arith.constant 0 : i32
    %474 = vector.broadcast %c0_i32_142 : i32 to vector<64x1xi32>
    %475 = arith.maxsi %473, %474 : vector<64x1xi32>
    %476 = vector.shape_cast %475 : vector<64x1xi32> to vector<64x1xi32>
    %477 = vector.broadcast %476 : vector<64x1xi32> to vector<64x128xi32>
    %478 = vector.shape_cast %477 : vector<64x128xi32> to vector<64x128x1xi32>
    %479 = vector.shape_cast %478 : vector<64x128x1xi32> to vector<64x128xi32>
    %480 = tpu.dynamic_gather %27[%479] in [0] : vector<64x128xf32>, vector<64x128xi32> -> vector<64x128xf32>
    %c0_i32_143 = arith.constant 0 : i32
    %481 = vector.broadcast %c0_i32_143 : i32 to vector<64x1xi32>
    %482 = arith.cmpi sge, %473, %481 : vector<64x1xi32>
    %cst_144 = arith.constant 0.000000e+00 : f32
    %483 = vector.shape_cast %482 : vector<64x1xi1> to vector<64x1xi1>
    %484 = vector.broadcast %483 : vector<64x1xi1> to vector<64x128xi1>
    %485 = vector.broadcast %cst_144 : f32 to vector<64x128xf32>
    %486 = arith.select %484, %480, %485 : vector<64x128xi1>, vector<64x128xf32>
    %487 = arith.truncf %486 : vector<64x128xf32> to vector<64x128xbf16>
    %c21 = arith.constant 21 : index
    %c0_145 = arith.constant 0 : index
    %c0_146 = arith.constant 0 : index
    %488 = vector.load %arg5[%c21, %c0_145, %c0_146] : memref<27x128x128xbf16, #tpu.memory_space<vmem>>, vector<1x128x128xbf16>
    %489 = vector.shape_cast %488 : vector<1x128x128xbf16> to vector<128x128xbf16>
    %cst_147 = arith.constant dense<0.000000e+00> : vector<64x128xf32>
    %490 = tpu.matmul %487, %489, %cst_147 {dimension_numbers = #tpu.dot_dimension_numbers<[1], [0], [0], [1], [0, 0, 1, 1], [], []>} : vector<64x128xbf16>, vector<128x128xbf16>, vector<64x128xf32> -> vector<64x128xf32>
    %491 = arith.addf %470, %490 : vector<64x128xf32>
    %492 = vector.extract_strided_slice %28 {offsets = [0, 22], sizes = [64, 1], strides = [1, 1]} : vector<64x27xi32> to vector<64x1xi32>
    %493 = vector.shape_cast %492 : vector<64x1xi32> to vector<64xi32>
    %494 = vector.shape_cast %493 : vector<64xi32> to vector<64x1xi32>
    %c0_i32_148 = arith.constant 0 : i32
    %495 = vector.broadcast %c0_i32_148 : i32 to vector<64x1xi32>
    %496 = arith.maxsi %494, %495 : vector<64x1xi32>
    %497 = vector.shape_cast %496 : vector<64x1xi32> to vector<64x1xi32>
    %498 = vector.broadcast %497 : vector<64x1xi32> to vector<64x128xi32>
    %499 = vector.shape_cast %498 : vector<64x128xi32> to vector<64x128x1xi32>
    %500 = vector.shape_cast %499 : vector<64x128x1xi32> to vector<64x128xi32>
    %501 = tpu.dynamic_gather %27[%500] in [0] : vector<64x128xf32>, vector<64x128xi32> -> vector<64x128xf32>
    %c0_i32_149 = arith.constant 0 : i32
    %502 = vector.broadcast %c0_i32_149 : i32 to vector<64x1xi32>
    %503 = arith.cmpi sge, %494, %502 : vector<64x1xi32>
    %cst_150 = arith.constant 0.000000e+00 : f32
    %504 = vector.shape_cast %503 : vector<64x1xi1> to vector<64x1xi1>
    %505 = vector.broadcast %504 : vector<64x1xi1> to vector<64x128xi1>
    %506 = vector.broadcast %cst_150 : f32 to vector<64x128xf32>
    %507 = arith.select %505, %501, %506 : vector<64x128xi1>, vector<64x128xf32>
    %508 = arith.truncf %507 : vector<64x128xf32> to vector<64x128xbf16>
    %c22 = arith.constant 22 : index
    %c0_151 = arith.constant 0 : index
    %c0_152 = arith.constant 0 : index
    %509 = vector.load %arg5[%c22, %c0_151, %c0_152] : memref<27x128x128xbf16, #tpu.memory_space<vmem>>, vector<1x128x128xbf16>
    %510 = vector.shape_cast %509 : vector<1x128x128xbf16> to vector<128x128xbf16>
    %cst_153 = arith.constant dense<0.000000e+00> : vector<64x128xf32>
    %511 = tpu.matmul %508, %510, %cst_153 {dimension_numbers = #tpu.dot_dimension_numbers<[1], [0], [0], [1], [0, 0, 1, 1], [], []>} : vector<64x128xbf16>, vector<128x128xbf16>, vector<64x128xf32> -> vector<64x128xf32>
    %512 = arith.addf %491, %511 : vector<64x128xf32>
    %513 = vector.extract_strided_slice %28 {offsets = [0, 23], sizes = [64, 1], strides = [1, 1]} : vector<64x27xi32> to vector<64x1xi32>
    %514 = vector.shape_cast %513 : vector<64x1xi32> to vector<64xi32>
    %515 = vector.shape_cast %514 : vector<64xi32> to vector<64x1xi32>
    %c0_i32_154 = arith.constant 0 : i32
    %516 = vector.broadcast %c0_i32_154 : i32 to vector<64x1xi32>
    %517 = arith.maxsi %515, %516 : vector<64x1xi32>
    %518 = vector.shape_cast %517 : vector<64x1xi32> to vector<64x1xi32>
    %519 = vector.broadcast %518 : vector<64x1xi32> to vector<64x128xi32>
    %520 = vector.shape_cast %519 : vector<64x128xi32> to vector<64x128x1xi32>
    %521 = vector.shape_cast %520 : vector<64x128x1xi32> to vector<64x128xi32>
    %522 = tpu.dynamic_gather %27[%521] in [0] : vector<64x128xf32>, vector<64x128xi32> -> vector<64x128xf32>
    %c0_i32_155 = arith.constant 0 : i32
    %523 = vector.broadcast %c0_i32_155 : i32 to vector<64x1xi32>
    %524 = arith.cmpi sge, %515, %523 : vector<64x1xi32>
    %cst_156 = arith.constant 0.000000e+00 : f32
    %525 = vector.shape_cast %524 : vector<64x1xi1> to vector<64x1xi1>
    %526 = vector.broadcast %525 : vector<64x1xi1> to vector<64x128xi1>
    %527 = vector.broadcast %cst_156 : f32 to vector<64x128xf32>
    %528 = arith.select %526, %522, %527 : vector<64x128xi1>, vector<64x128xf32>
    %529 = arith.truncf %528 : vector<64x128xf32> to vector<64x128xbf16>
    %c23 = arith.constant 23 : index
    %c0_157 = arith.constant 0 : index
    %c0_158 = arith.constant 0 : index
    %530 = vector.load %arg5[%c23, %c0_157, %c0_158] : memref<27x128x128xbf16, #tpu.memory_space<vmem>>, vector<1x128x128xbf16>
    %531 = vector.shape_cast %530 : vector<1x128x128xbf16> to vector<128x128xbf16>
    %cst_159 = arith.constant dense<0.000000e+00> : vector<64x128xf32>
    %532 = tpu.matmul %529, %531, %cst_159 {dimension_numbers = #tpu.dot_dimension_numbers<[1], [0], [0], [1], [0, 0, 1, 1], [], []>} : vector<64x128xbf16>, vector<128x128xbf16>, vector<64x128xf32> -> vector<64x128xf32>
    %533 = arith.addf %512, %532 : vector<64x128xf32>
    %534 = vector.extract_strided_slice %28 {offsets = [0, 24], sizes = [64, 1], strides = [1, 1]} : vector<64x27xi32> to vector<64x1xi32>
    %535 = vector.shape_cast %534 : vector<64x1xi32> to vector<64xi32>
    %536 = vector.shape_cast %535 : vector<64xi32> to vector<64x1xi32>
    %c0_i32_160 = arith.constant 0 : i32
    %537 = vector.broadcast %c0_i32_160 : i32 to vector<64x1xi32>
    %538 = arith.maxsi %536, %537 : vector<64x1xi32>
    %539 = vector.shape_cast %538 : vector<64x1xi32> to vector<64x1xi32>
    %540 = vector.broadcast %539 : vector<64x1xi32> to vector<64x128xi32>
    %541 = vector.shape_cast %540 : vector<64x128xi32> to vector<64x128x1xi32>
    %542 = vector.shape_cast %541 : vector<64x128x1xi32> to vector<64x128xi32>
    %543 = tpu.dynamic_gather %27[%542] in [0] : vector<64x128xf32>, vector<64x128xi32> -> vector<64x128xf32>
    %c0_i32_161 = arith.constant 0 : i32
    %544 = vector.broadcast %c0_i32_161 : i32 to vector<64x1xi32>
    %545 = arith.cmpi sge, %536, %544 : vector<64x1xi32>
    %cst_162 = arith.constant 0.000000e+00 : f32
    %546 = vector.shape_cast %545 : vector<64x1xi1> to vector<64x1xi1>
    %547 = vector.broadcast %546 : vector<64x1xi1> to vector<64x128xi1>
    %548 = vector.broadcast %cst_162 : f32 to vector<64x128xf32>
    %549 = arith.select %547, %543, %548 : vector<64x128xi1>, vector<64x128xf32>
    %550 = arith.truncf %549 : vector<64x128xf32> to vector<64x128xbf16>
    %c24 = arith.constant 24 : index
    %c0_163 = arith.constant 0 : index
    %c0_164 = arith.constant 0 : index
    %551 = vector.load %arg5[%c24, %c0_163, %c0_164] : memref<27x128x128xbf16, #tpu.memory_space<vmem>>, vector<1x128x128xbf16>
    %552 = vector.shape_cast %551 : vector<1x128x128xbf16> to vector<128x128xbf16>
    %cst_165 = arith.constant dense<0.000000e+00> : vector<64x128xf32>
    %553 = tpu.matmul %550, %552, %cst_165 {dimension_numbers = #tpu.dot_dimension_numbers<[1], [0], [0], [1], [0, 0, 1, 1], [], []>} : vector<64x128xbf16>, vector<128x128xbf16>, vector<64x128xf32> -> vector<64x128xf32>
    %554 = arith.addf %533, %553 : vector<64x128xf32>
    %555 = vector.extract_strided_slice %28 {offsets = [0, 25], sizes = [64, 1], strides = [1, 1]} : vector<64x27xi32> to vector<64x1xi32>
    %556 = vector.shape_cast %555 : vector<64x1xi32> to vector<64xi32>
    %557 = vector.shape_cast %556 : vector<64xi32> to vector<64x1xi32>
    %c0_i32_166 = arith.constant 0 : i32
    %558 = vector.broadcast %c0_i32_166 : i32 to vector<64x1xi32>
    %559 = arith.maxsi %557, %558 : vector<64x1xi32>
    %560 = vector.shape_cast %559 : vector<64x1xi32> to vector<64x1xi32>
    %561 = vector.broadcast %560 : vector<64x1xi32> to vector<64x128xi32>
    %562 = vector.shape_cast %561 : vector<64x128xi32> to vector<64x128x1xi32>
    %563 = vector.shape_cast %562 : vector<64x128x1xi32> to vector<64x128xi32>
    %564 = tpu.dynamic_gather %27[%563] in [0] : vector<64x128xf32>, vector<64x128xi32> -> vector<64x128xf32>
    %c0_i32_167 = arith.constant 0 : i32
    %565 = vector.broadcast %c0_i32_167 : i32 to vector<64x1xi32>
    %566 = arith.cmpi sge, %557, %565 : vector<64x1xi32>
    %cst_168 = arith.constant 0.000000e+00 : f32
    %567 = vector.shape_cast %566 : vector<64x1xi1> to vector<64x1xi1>
    %568 = vector.broadcast %567 : vector<64x1xi1> to vector<64x128xi1>
    %569 = vector.broadcast %cst_168 : f32 to vector<64x128xf32>
    %570 = arith.select %568, %564, %569 : vector<64x128xi1>, vector<64x128xf32>
    %571 = arith.truncf %570 : vector<64x128xf32> to vector<64x128xbf16>
    %c25 = arith.constant 25 : index
    %c0_169 = arith.constant 0 : index
    %c0_170 = arith.constant 0 : index
    %572 = vector.load %arg5[%c25, %c0_169, %c0_170] : memref<27x128x128xbf16, #tpu.memory_space<vmem>>, vector<1x128x128xbf16>
    %573 = vector.shape_cast %572 : vector<1x128x128xbf16> to vector<128x128xbf16>
    %cst_171 = arith.constant dense<0.000000e+00> : vector<64x128xf32>
    %574 = tpu.matmul %571, %573, %cst_171 {dimension_numbers = #tpu.dot_dimension_numbers<[1], [0], [0], [1], [0, 0, 1, 1], [], []>} : vector<64x128xbf16>, vector<128x128xbf16>, vector<64x128xf32> -> vector<64x128xf32>
    %575 = arith.addf %554, %574 : vector<64x128xf32>
    %576 = vector.extract_strided_slice %28 {offsets = [0, 26], sizes = [64, 1], strides = [1, 1]} : vector<64x27xi32> to vector<64x1xi32>
    %577 = vector.shape_cast %576 : vector<64x1xi32> to vector<64xi32>
    %578 = vector.shape_cast %577 : vector<64xi32> to vector<64x1xi32>
    %c0_i32_172 = arith.constant 0 : i32
    %579 = vector.broadcast %c0_i32_172 : i32 to vector<64x1xi32>
    %580 = arith.maxsi %578, %579 : vector<64x1xi32>
    %581 = vector.shape_cast %580 : vector<64x1xi32> to vector<64x1xi32>
    %582 = vector.broadcast %581 : vector<64x1xi32> to vector<64x128xi32>
    %583 = vector.shape_cast %582 : vector<64x128xi32> to vector<64x128x1xi32>
    %584 = vector.shape_cast %583 : vector<64x128x1xi32> to vector<64x128xi32>
    %585 = tpu.dynamic_gather %27[%584] in [0] : vector<64x128xf32>, vector<64x128xi32> -> vector<64x128xf32>
    %c0_i32_173 = arith.constant 0 : i32
    %586 = vector.broadcast %c0_i32_173 : i32 to vector<64x1xi32>
    %587 = arith.cmpi sge, %578, %586 : vector<64x1xi32>
    %cst_174 = arith.constant 0.000000e+00 : f32
    %588 = vector.shape_cast %587 : vector<64x1xi1> to vector<64x1xi1>
    %589 = vector.broadcast %588 : vector<64x1xi1> to vector<64x128xi1>
    %590 = vector.broadcast %cst_174 : f32 to vector<64x128xf32>
    %591 = arith.select %589, %585, %590 : vector<64x128xi1>, vector<64x128xf32>
    %592 = arith.truncf %591 : vector<64x128xf32> to vector<64x128xbf16>
    %c26 = arith.constant 26 : index
    %c0_175 = arith.constant 0 : index
    %c0_176 = arith.constant 0 : index
    %593 = vector.load %arg5[%c26, %c0_175, %c0_176] : memref<27x128x128xbf16, #tpu.memory_space<vmem>>, vector<1x128x128xbf16>
    %594 = vector.shape_cast %593 : vector<1x128x128xbf16> to vector<128x128xbf16>
    %cst_177 = arith.constant dense<0.000000e+00> : vector<64x128xf32>
    %595 = tpu.matmul %592, %594, %cst_177 {dimension_numbers = #tpu.dot_dimension_numbers<[1], [0], [0], [1], [0, 0, 1, 1], [], []>} : vector<64x128xbf16>, vector<128x128xbf16>, vector<64x128xf32> -> vector<64x128xf32>
    %596 = arith.addf %575, %595 : vector<64x128xf32>
    %c0_178 = arith.constant 0 : index
    %c0_179 = arith.constant 0 : index
    %597 = vector.load %arg6[%c0_178, %c0_179] : memref<1x128xf32, #tpu.memory_space<vmem>>, vector<1x128xf32>
    %c0_180 = arith.constant 0 : index
    %c0_181 = arith.constant 0 : index
    %598 = vector.load %arg7[%c0_180, %c0_181] : memref<1x128xf32, #tpu.memory_space<vmem>>, vector<1x128xf32>
    %cst_182 = arith.constant dense<0.000000e+00> : vector<128xf32>
    %599 = vector.multi_reduction <add>, %596, %cst_182 [0] : vector<64x128xf32> to vector<128xf32>
    %600 = vector.shape_cast %599 : vector<128xf32> to vector<1x128xf32>
    %cst_183 = arith.constant 1.562500e-02 : f32
    %601 = vector.broadcast %cst_183 : f32 to vector<1x128xf32>
    %602 = arith.mulf %600, %601 : vector<1x128xf32>
    %603 = vector.broadcast %602 : vector<1x128xf32> to vector<64x128xf32>
    %604 = arith.subf %596, %603 : vector<64x128xf32>
    %605 = arith.mulf %604, %604 : vector<64x128xf32>
    %cst_184 = arith.constant dense<0.000000e+00> : vector<128xf32>
    %606 = vector.multi_reduction <add>, %605, %cst_184 [0] : vector<64x128xf32> to vector<128xf32>
    %607 = vector.shape_cast %606 : vector<128xf32> to vector<1x128xf32>
    %cst_185 = arith.constant 1.562500e-02 : f32
    %608 = vector.broadcast %cst_185 : f32 to vector<1x128xf32>
    %609 = arith.mulf %607, %608 : vector<1x128xf32>
    %cst_186 = arith.constant 9.99999974E-6 : f32
    %610 = vector.broadcast %cst_186 : f32 to vector<1x128xf32>
    %611 = arith.addf %609, %610 : vector<1x128xf32>
    %612 = math.rsqrt %611 : vector<1x128xf32>
    %613 = vector.broadcast %612 : vector<1x128xf32> to vector<64x128xf32>
    %614 = arith.mulf %604, %613 : vector<64x128xf32>
    %615 = vector.broadcast %597 : vector<1x128xf32> to vector<64x128xf32>
    %616 = arith.mulf %614, %615 : vector<64x128xf32>
    %617 = vector.broadcast %598 : vector<1x128xf32> to vector<64x128xf32>
    %618 = arith.addf %616, %617 : vector<64x128xf32>
    %cst_187 = arith.constant 0.000000e+00 : f32
    %619 = vector.broadcast %cst_187 : f32 to vector<64x128xf32>
    %620 = arith.maximumf %618, %619 : vector<64x128xf32>
    %621 = arith.truncf %620 : vector<64x128xf32> to vector<64x128xbf16>
    %c0_188 = arith.constant 0 : index
    %c0_189 = arith.constant 0 : index
    %622 = vector.load %arg8[%c0_188, %c0_189] : memref<128x128xbf16, #tpu.memory_space<vmem>>, vector<128x128xbf16>
    %cst_190 = arith.constant dense<0.000000e+00> : vector<64x128xf32>
    %623 = tpu.matmul %621, %622, %cst_190 {dimension_numbers = #tpu.dot_dimension_numbers<[1], [0], [0], [1], [0, 0, 1, 1], [], []>} : vector<64x128xbf16>, vector<128x128xbf16>, vector<64x128xf32> -> vector<64x128xf32>
    %c0_191 = arith.constant 0 : index
    %c0_192 = arith.constant 0 : index
    %624 = vector.load %arg9[%c0_191, %c0_192] : memref<1x128xf32, #tpu.memory_space<vmem>>, vector<1x128xf32>
    %c0_193 = arith.constant 0 : index
    %c0_194 = arith.constant 0 : index
    %625 = vector.load %arg10[%c0_193, %c0_194] : memref<1x128xf32, #tpu.memory_space<vmem>>, vector<1x128xf32>
    %cst_195 = arith.constant dense<0.000000e+00> : vector<128xf32>
    %626 = vector.multi_reduction <add>, %623, %cst_195 [0] : vector<64x128xf32> to vector<128xf32>
    %627 = vector.shape_cast %626 : vector<128xf32> to vector<1x128xf32>
    %cst_196 = arith.constant 1.562500e-02 : f32
    %628 = vector.broadcast %cst_196 : f32 to vector<1x128xf32>
    %629 = arith.mulf %627, %628 : vector<1x128xf32>
    %630 = vector.broadcast %629 : vector<1x128xf32> to vector<64x128xf32>
    %631 = arith.subf %623, %630 : vector<64x128xf32>
    %632 = arith.mulf %631, %631 : vector<64x128xf32>
    %cst_197 = arith.constant dense<0.000000e+00> : vector<128xf32>
    %633 = vector.multi_reduction <add>, %632, %cst_197 [0] : vector<64x128xf32> to vector<128xf32>
    %634 = vector.shape_cast %633 : vector<128xf32> to vector<1x128xf32>
    %cst_198 = arith.constant 1.562500e-02 : f32
    %635 = vector.broadcast %cst_198 : f32 to vector<1x128xf32>
    %636 = arith.mulf %634, %635 : vector<1x128xf32>
    %cst_199 = arith.constant 9.99999974E-6 : f32
    %637 = vector.broadcast %cst_199 : f32 to vector<1x128xf32>
    %638 = arith.addf %636, %637 : vector<1x128xf32>
    %639 = math.rsqrt %638 : vector<1x128xf32>
    %640 = vector.broadcast %639 : vector<1x128xf32> to vector<64x128xf32>
    %641 = arith.mulf %631, %640 : vector<64x128xf32>
    %642 = vector.broadcast %624 : vector<1x128xf32> to vector<64x128xf32>
    %643 = arith.mulf %641, %642 : vector<64x128xf32>
    %644 = vector.broadcast %625 : vector<1x128xf32> to vector<64x128xf32>
    %645 = arith.addf %643, %644 : vector<64x128xf32>
    %c0_200 = arith.constant 0 : index
    %c0_201 = arith.constant 0 : index
    %646 = vector.load %arg11[%c0_200, %c0_201] : memref<16x128xbf16, #tpu.memory_space<vmem>>, vector<16x128xbf16>
    %cst_202 = arith.constant dense<0.000000e+00> : vector<64x128xf32>
    %647 = tpu.matmul %1, %646, %cst_202 {dimension_numbers = #tpu.dot_dimension_numbers<[1], [0], [0], [1], [0, 0, 1, 1], [], []>} : vector<64x16xbf16>, vector<16x128xbf16>, vector<64x128xf32> -> vector<64x128xf32>
    %c0_203 = arith.constant 0 : index
    %c0_204 = arith.constant 0 : index
    %648 = vector.load %arg12[%c0_203, %c0_204] : memref<1x128xf32, #tpu.memory_space<vmem>>, vector<1x128xf32>
    %c0_205 = arith.constant 0 : index
    %c0_206 = arith.constant 0 : index
    %649 = vector.load %arg13[%c0_205, %c0_206] : memref<1x128xf32, #tpu.memory_space<vmem>>, vector<1x128xf32>
    %cst_207 = arith.constant dense<0.000000e+00> : vector<128xf32>
    %650 = vector.multi_reduction <add>, %647, %cst_207 [0] : vector<64x128xf32> to vector<128xf32>
    %651 = vector.shape_cast %650 : vector<128xf32> to vector<1x128xf32>
    %cst_208 = arith.constant 1.562500e-02 : f32
    %652 = vector.broadcast %cst_208 : f32 to vector<1x128xf32>
    %653 = arith.mulf %651, %652 : vector<1x128xf32>
    %654 = vector.broadcast %653 : vector<1x128xf32> to vector<64x128xf32>
    %655 = arith.subf %647, %654 : vector<64x128xf32>
    %656 = arith.mulf %655, %655 : vector<64x128xf32>
    %cst_209 = arith.constant dense<0.000000e+00> : vector<128xf32>
    %657 = vector.multi_reduction <add>, %656, %cst_209 [0] : vector<64x128xf32> to vector<128xf32>
    %658 = vector.shape_cast %657 : vector<128xf32> to vector<1x128xf32>
    %cst_210 = arith.constant 1.562500e-02 : f32
    %659 = vector.broadcast %cst_210 : f32 to vector<1x128xf32>
    %660 = arith.mulf %658, %659 : vector<1x128xf32>
    %cst_211 = arith.constant 9.99999974E-6 : f32
    %661 = vector.broadcast %cst_211 : f32 to vector<1x128xf32>
    %662 = arith.addf %660, %661 : vector<1x128xf32>
    %663 = math.rsqrt %662 : vector<1x128xf32>
    %664 = vector.broadcast %663 : vector<1x128xf32> to vector<64x128xf32>
    %665 = arith.mulf %655, %664 : vector<64x128xf32>
    %666 = vector.broadcast %648 : vector<1x128xf32> to vector<64x128xf32>
    %667 = arith.mulf %665, %666 : vector<64x128xf32>
    %668 = vector.broadcast %649 : vector<1x128xf32> to vector<64x128xf32>
    %669 = arith.addf %667, %668 : vector<64x128xf32>
    %670 = arith.addf %645, %669 : vector<64x128xf32>
    %cst_212 = arith.constant 0.000000e+00 : f32
    %671 = vector.broadcast %cst_212 : f32 to vector<64x128xf32>
    %672 = arith.maximumf %670, %671 : vector<64x128xf32>
    %673 = arith.truncf %672 : vector<64x128xf32> to vector<64x128xbf16>
    %c0_213 = arith.constant 0 : index
    %c0_214 = arith.constant 0 : index
    %674 = vector.load %arg14[%c0_213, %c0_214] : memref<64x128xbf16, #tpu.memory_space<vmem>>, vector<64x128xbf16>
    tpu.vector_store %arg14[%c0_213, %c0_214], %673 {strides = array<i32>} : memref<64x128xbf16, #tpu.memory_space<vmem>>, vector<64x128xbf16>,
    return
  }
}

module attributes {stable_mosaic.version = 11 : i64} {
  func.func @_stage1_kernel(%arg0: memref<64x16xf32, #tpu.memory_space<vmem>>, %arg1: memref<16x128xbf16, #tpu.memory_space<vmem>>, %arg2: memref<1x128xf32, #tpu.memory_space<vmem>>, %arg3: memref<1x128xf32, #tpu.memory_space<vmem>>, %arg4: memref<64x128xbf16, #tpu.memory_space<vmem>>) attributes {dimension_semantics = [], scalar_prefetch = 0 : i64, scratch_operands = 0 : i64, tpu.core_type = #tpu.core_type<tc>} {
    %c0 = arith.constant 0 : index
    %c0_0 = arith.constant 0 : index
    %0 = vector.load %arg0[%c0, %c0_0] : memref<64x16xf32, #tpu.memory_space<vmem>>, vector<64x16xf32>
    %1 = arith.truncf %0 : vector<64x16xf32> to vector<64x16xbf16>
    %c0_1 = arith.constant 0 : index
    %c0_2 = arith.constant 0 : index
    %2 = vector.load %arg1[%c0_1, %c0_2] : memref<16x128xbf16, #tpu.memory_space<vmem>>, vector<16x128xbf16>
    %cst = arith.constant dense<0.000000e+00> : vector<64x128xf32>
    %3 = tpu.matmul %1, %2, %cst {dimension_numbers = #tpu.dot_dimension_numbers<[1], [0], [0], [1], [0, 0, 1, 1], [], []>} : vector<64x16xbf16>, vector<16x128xbf16>, vector<64x128xf32> -> vector<64x128xf32>
    %c0_3 = arith.constant 0 : index
    %c0_4 = arith.constant 0 : index
    %4 = vector.load %arg2[%c0_3, %c0_4] : memref<1x128xf32, #tpu.memory_space<vmem>>, vector<1x128xf32>
    %c0_5 = arith.constant 0 : index
    %c0_6 = arith.constant 0 : index
    %5 = vector.load %arg3[%c0_5, %c0_6] : memref<1x128xf32, #tpu.memory_space<vmem>>, vector<1x128xf32>
    %cst_7 = arith.constant dense<0.000000e+00> : vector<128xf32>
    %6 = vector.multi_reduction <add>, %3, %cst_7 [0] : vector<64x128xf32> to vector<128xf32>
    %7 = vector.shape_cast %6 : vector<128xf32> to vector<1x128xf32>
    %cst_8 = arith.constant 1.562500e-02 : f32
    %8 = vector.broadcast %cst_8 : f32 to vector<1x128xf32>
    %9 = arith.mulf %7, %8 : vector<1x128xf32>
    %10 = vector.broadcast %9 : vector<1x128xf32> to vector<64x128xf32>
    %11 = arith.subf %3, %10 : vector<64x128xf32>
    %12 = arith.mulf %11, %11 : vector<64x128xf32>
    %cst_9 = arith.constant dense<0.000000e+00> : vector<128xf32>
    %13 = vector.multi_reduction <add>, %12, %cst_9 [0] : vector<64x128xf32> to vector<128xf32>
    %14 = vector.shape_cast %13 : vector<128xf32> to vector<1x128xf32>
    %cst_10 = arith.constant 1.562500e-02 : f32
    %15 = vector.broadcast %cst_10 : f32 to vector<1x128xf32>
    %16 = arith.mulf %14, %15 : vector<1x128xf32>
    %cst_11 = arith.constant 9.99999974E-6 : f32
    %17 = vector.broadcast %cst_11 : f32 to vector<1x128xf32>
    %18 = arith.addf %16, %17 : vector<1x128xf32>
    %19 = math.rsqrt %18 : vector<1x128xf32>
    %20 = vector.broadcast %19 : vector<1x128xf32> to vector<64x128xf32>
    %21 = arith.mulf %11, %20 : vector<64x128xf32>
    %22 = vector.broadcast %4 : vector<1x128xf32> to vector<64x128xf32>
    %23 = arith.mulf %21, %22 : vector<64x128xf32>
    %24 = vector.broadcast %5 : vector<1x128xf32> to vector<64x128xf32>
    %25 = arith.addf %23, %24 : vector<64x128xf32>
    %cst_12 = arith.constant 0.000000e+00 : f32
    %26 = vector.broadcast %cst_12 : f32 to vector<64x128xf32>
    %27 = arith.maximumf %25, %26 : vector<64x128xf32>
    %28 = arith.truncf %27 : vector<64x128xf32> to vector<64x128xbf16>
    %c0_13 = arith.constant 0 : index
    %c0_14 = arith.constant 0 : index
    %29 = vector.load %arg4[%c0_13, %c0_14] : memref<64x128xbf16, #tpu.memory_space<vmem>>, vector<64x128xbf16>
    tpu.vector_store %arg4[%c0_13, %c0_14], %28 {strides = array<i32>} : memref<64x128xbf16, #tpu.memory_space<vmem>>, vector<64x128xbf16>,
    return
  }
}

</mosaic_0001>

<llo_original>
// kernel: tpu_custom_call.1
$region0: #{tpu_custom_call.1}
  #allocation0 [shape = 'u32[]', space=smem, size = 0x4, offset = 0x4, fixed_abs, tag = 'smem constant byte address 0x4 - core index']
  #allocation1 [shape = 'u32[72,128]{1,0:T(1,128)}', space=vmem, size = 0x9000, scoped, tag = 'internal scratch']
  %s0 = inlined_call_operand.vmem [shape: f32[64,16], index: 0, kind: input, shape index: {}]
  %s1 = inlined_call_operand.vmem [shape: bf16[16,128], index: 1, kind: input, shape index: {}]
  %s2 = inlined_call_operand.vmem [shape: f32[1,128], index: 2, kind: input, shape index: {}]
  %s3 = inlined_call_operand.vmem [shape: f32[1,128], index: 3, kind: input, shape index: {}]
  %s4 = inlined_call_operand.hbm [shape: bf16[64,128], index: 4, kind: output, shape index: {}]
  %s5 = sld [smem:[#allocation0]]
  $region26: #{tpu_custom_call.1} parent=0
    _
  %s7 = ssub.s32 1, %s5
  %s8 = scalar_select 0, %s7, %s5
  $region1: #{tpu_custom_call.1} parent=0
    #allocation2 [shape = 'u8[16384]{0}', space=vmem, size = 0x4000, scoped, tag = 'output window, operand 0, single buffered']
    #allocation3 [shape = 's32[1]{0}', space=sflag, size = 0x4, scoped, tag = 'scoped memory for tpu_custom_call.1']
    %9 = vsyncpa [#allocation3], 0
    // Predicated region
    $region2: #{tpu_custom_call.1} parent=1 // pred_check
      _
    $region3: #{tpu_custom_call.1} parent=1 // pred_check_branch
      %11 = sbr.rel (0) target = $region5
    $region4: #{tpu_custom_call.1} parent=1 // pred_region
      _
    $region5: #{tpu_custom_call.1} parent=1 // pred_fallthru
      _
    // Predicated region
    $region6: #{tpu_custom_call.1} parent=1 // pred_check
      _
    $region7: #{tpu_custom_call.1} parent=1 // pred_check_branch
      %13 = sbr.rel (0) target = $region9
    $region8: #{tpu_custom_call.1} parent=1 // pred_region
      _
    $region9: #{tpu_custom_call.1} parent=1 // pred_fallthru
      _
    // Predicated region
    $region10: #{tpu_custom_call.1} parent=1 // pred_check
      _
    $region11: #{tpu_custom_call.1} parent=1 // pred_check_branch
      %15 = sbr.rel (0) target = $region13
    $region12: #{tpu_custom_call.1} parent=1 // pred_region
      _
    $region13: #{tpu_custom_call.1} parent=1 // pred_fallthru
      _
    // Predicated region
    $region14: #{tpu_custom_call.1} parent=1 // pred_check
      _
    $region15: #{tpu_custom_call.1} parent=1 // pred_check_branch
      %17 = sbr.rel (0) target = $region17
    $region16: #{tpu_custom_call.1} parent=1 // pred_region
      _
    $region17: #{tpu_custom_call.1} parent=1 // pred_fallthru
      _
    %v19 = vld [vmem:[%s0] sm:$0xff]
    %v20 = vld [vmem:[%s0 + $0x8] sm:$0xff]
    %v21 = vld [vmem:[%s0 + $0x10] sm:$0xff]
    %v22 = vld [vmem:[%s0 + $0x18] sm:$0xff]
    %v23 = vld [vmem:[%s0 + $0x20] sm:$0xff]
    %v24 = vld [vmem:[%s0 + $0x28] sm:$0xff]
    %v25 = vld [vmem:[%s0 + $0x30] sm:$0xff]
    %v26 = vld [vmem:[%s0 + $0x38] sm:$0xff]
    %v27 = vpack.c.bf16 %v20, %v19
    %v28 = vpack.c.bf16 %v22, %v21
    %v29 = vpack.c.bf16 %v24, %v23
    %v30 = vpack.c.bf16 %v26, %v25
    %v31 = vld [vmem:[%s1] sm:$0xf]
    %v32 = vld [vmem:[%s1 + $0x4] sm:$0xf]
    %v35 = vunpack.c.l.b16 %v31
    %v36 = vunpack.c.l.b16 %v32
    %v37 = vpack.c.b16 %v36, %v35
    %vm39 = vcmask 130048
    %v41 = vsel %vm39, %v27, 0
    %v44 = vsel %vm39, %v28, 0
    %v47 = vsel %vm39, %v29, 0
    %v50 = vsel %vm39, %v30, 0
    %52 = vmatpush.bf16.msra.mxu0 0
    %53 = vmatpush.bf16.msra.mxu0 0
    %54 = vmatpush.bf16.msra.mxu0 0
    %55 = vmatpush.bf16.msra.mxu0 0
    %56 = vmatpush.bf16.msra.mxu0 0
    %57 = vmatpush.bf16.msra.mxu0 0
    %58 = vmatpush.bf16.msra.mxu0 0
    %59 = vmatpush.bf16.msra.mxu0 %v37
    %60 = vmatmul.bf16.gmra.mxu0 %v41
    %v61 = vpop.f32.mrf.mxu0
    %v62 = vadd.f32 0.0, %v61
    %v63 = vpop.f32.mrf.mxu0
    %v64 = vadd.f32 0.0, %v63
    %65 = vmatmul.bf16.gmra.mxu0 %v44
    %v66 = vpop.f32.mrf.mxu0
    %v67 = vadd.f32 0.0, %v66
    %v68 = vpop.f32.mrf.mxu0
    %v69 = vadd.f32 0.0, %v68
    %70 = vmatmul.bf16.gmra.mxu0 %v47
    %v71 = vpop.f32.mrf.mxu0
    %v72 = vadd.f32 0.0, %v71
    %v73 = vpop.f32.mrf.mxu0
    %v74 = vadd.f32 0.0, %v73
    %75 = vmatmul.bf16.gmra.mxu0 %v50
    %v76 = vpop.f32.mrf.mxu0
    %v77 = vadd.f32 0.0, %v76
    %v78 = vpop.f32.mrf.mxu0
    %v79 = vadd.f32 0.0, %v78
    %80 = vdwg.mxu0
    %v81 = vld [vmem:[%s2] sm:$0x1]
    %v82 = vld [vmem:[%s3] sm:$0x1]
    %v83 = vadd.f32 %v62, %v64
    %v84 = vadd.f32 %v83, %v67
    %v85 = vadd.f32 %v84, %v69
    %v86 = vadd.f32 %v85, %v72
    %v87 = vadd.f32 %v86, %v74
    %v88 = vadd.f32 %v87, %v77
    %v89 = vadd.f32 %v88, %v79
    %v90 = vrot.slane %v89, 4
    %v91 = vadd.f32 %v89, %v90
    %v92 = vrot.slane %v91, 2
    %v93 = vadd.f32 %v91, %v92
    %v94 = vrot.slane %v93, 1
    %v95 = vadd.f32 %v93, %v94
    %v96 = vmul.f32 %v95, 0.015625
    %v97 = vsub.f32 %v62, %v96
    %v98 = vsub.f32 %v64, %v96
    %v99 = vsub.f32 %v67, %v96
    %v100 = vsub.f32 %v69, %v96
    %v101 = vsub.f32 %v72, %v96
    %v102 = vsub.f32 %v74, %v96
    %v103 = vsub.f32 %v77, %v96
    %v104 = vsub.f32 %v79, %v96
    %v105 = vmul.f32 %v97, %v97
    %v106 = vmul.f32 %v98, %v98
    %v107 = vmul.f32 %v99, %v99
    %v108 = vmul.f32 %v100, %v100
    %v109 = vmul.f32 %v101, %v101
    %v110 = vmul.f32 %v102, %v102
    %v111 = vmul.f32 %v103, %v103
    %v112 = vmul.f32 %v104, %v104
    %v113 = vadd.f32 %v105, %v106
    %v114 = vadd.f32 %v113, %v107
    %v115 = vadd.f32 %v114, %v108
    %v116 = vadd.f32 %v115, %v109
    %v117 = vadd.f32 %v116, %v110
    %v118 = vadd.f32 %v117, %v111
    %v119 = vadd.f32 %v118, %v112
    %v120 = vrot.slane %v119, 4
    %v121 = vadd.f32 %v119, %v120
    %v122 = vrot.slane %v121, 2
    %v123 = vadd.f32 %v121, %v122
    %v124 = vrot.slane %v123, 1
    %v125 = vadd.f32 %v123, %v124
    %v126 = vmul.f32 %v125, 0.015625
    %v127 = vadd.f32 %v126, 1e-05
    %v128 = vrsqrt.pop %v127
    %v129 = vmul.f32 %v128, %v127
    %v130 = vmul.f32 %v129, %v128
    %v131 = vmul.f32 0.5, %v130
    %v132 = vsub.f32 1.5, %v131
    %v133 = vmul.f32 %v128, %v132
    %vm134 = vweird.f32 %v127
    %vm135 = vweird.f32 %v128
    %vm136 = vmor %vm134, %vm135
    %v137 = vsel %vm136, %v128, %v133
    %v138 = vmul.f32 %v97, %v137
    %v139 = vmul.f32 %v98, %v137
    %v140 = vmul.f32 %v99, %v137
    %v141 = vmul.f32 %v100, %v137
    %v142 = vmul.f32 %v101, %v137
    %v143 = vmul.f32 %v102, %v137
    %v144 = vmul.f32 %v103, %v137
    %v145 = vmul.f32 %v104, %v137
    %v147 = vperm.slane %v81, 0
    %v149 = vmul.f32 %v138, %v147
    %v150 = vmul.f32 %v139, %v147
    %v151 = vmul.f32 %v140, %v147
    %v152 = vmul.f32 %v141, %v147
    %v153 = vmul.f32 %v142, %v147
    %v154 = vmul.f32 %v143, %v147
    %v155 = vmul.f32 %v144, %v147
    %v156 = vmul.f32 %v145, %v147
    %v158 = vperm.slane %v82, 0
    %v160 = vadd.f32 %v149, %v158
    %v161 = vadd.f32 %v150, %v158
    %v162 = vadd.f32 %v151, %v158
    %v163 = vadd.f32 %v152, %v158
    %v164 = vadd.f32 %v153, %v158
    %v165 = vadd.f32 %v154, %v158
    %v166 = vadd.f32 %v155, %v158
    %v167 = vadd.f32 %v156, %v158
    %v168 = vmax.f32 %v160, 0.0
    %v169 = vmax.f32 %v161, 0.0
    %v170 = vmax.f32 %v162, 0.0
    %v171 = vmax.f32 %v163, 0.0
    %v172 = vmax.f32 %v164, 0.0
    %v173 = vmax.f32 %v165, 0.0
    %v174 = vmax.f32 %v166, 0.0
    %v175 = vmax.f32 %v167, 0.0
    %v176 = vpack.c.bf16 %v168, %v168
    %v177 = vpack.c.bf16 %v169, %v169
    %v178 = vpack.c.bf16 %v170, %v170
    %v179 = vpack.c.bf16 %v171, %v171
    %v180 = vpack.c.bf16 %v172, %v172
    %v181 = vpack.c.bf16 %v173, %v173
    %v182 = vpack.c.bf16 %v174, %v174
    %v183 = vpack.c.bf16 %v175, %v175
    %184 = vst [vmem:[#allocation2] sm:$0xf] %v176
    %185 = vst [vmem:[#allocation2 + $0x4] sm:$0xf] %v177
    %186 = vst [vmem:[#allocation2 + $0x8] sm:$0xf] %v178
    %187 = vst [vmem:[#allocation2 + $0xc] sm:$0xf] %v179
    %188 = vst [vmem:[#allocation2 + $0x10] sm:$0xf] %v180
    %189 = vst [vmem:[#allocation2 + $0x14] sm:$0xf] %v181
    %190 = vst [vmem:[#allocation2 + $0x18] sm:$0xf] %v182
    %191 = vst [vmem:[#allocation2 + $0x1c] sm:$0xf] %v183
    // Predicated region
    $region18: #{tpu_custom_call.1} parent=1 // pred_check
      _
    $region19: #{tpu_custom_call.1} parent=1 // pred_check_branch
      %193 = sbr.rel (0) target = $region21
    $region20: #{tpu_custom_call.1} parent=1 // pred_region
      %195 = vsyncadd [#allocation3], 0
      %s196 = sshll.u32 [#allocation2], 4
      %s197 = int_to_ptr.vmem [resolvable:$true] %s196
      %s198 = sshll.u32 %s4, 4
      %s199 = int_to_ptr.hbm [resolvable:$true] %s198
      %204 = dma.vmem_to_hbm [thread:$0]  %s197, 512, %s199, [#allocation3], 64, 64, 4
    $region21: #{tpu_custom_call.1} parent=1 // pred_fallthru
      _
    // Predicated region
    $region22: #{tpu_custom_call.1} parent=1 // pred_check
      _
    $region23: #{tpu_custom_call.1} parent=1 // pred_check_branch
      %206 = sbr.rel (0) target = $region25
    $region24: #{tpu_custom_call.1} parent=1 // pred_region
      %208 = dma.done [#allocation3], 512
    $region25: #{tpu_custom_call.1} parent=1 // pred_fallthru
      _
    %209 = vsyncpa [#allocation3], 1

</llo_original>
